<compile_context>
chip_gen: v7x
topology: tpu7x:2x2x1
jax: 0.10.0
libtpu: 0.0.40
codegen_flags: <defaults>
</compile_context>

<pallas_src>
import jax
import jax.numpy as jnp
from jax.experimental import pallas as pl
from jax.experimental.pallas import tpu as pltpu


def peep_lstm_kernel(x_ref, wx_ref, wh_ref, bg_ref, wpt_ref, bp_ref, out_ref, zx_scr):
    # x_ref  : (E_pad, S*B)  embedded inputs; column t*B + b = x_emb[b, t, :]
    # wx_ref : (4H, E_pad)   stacked [Wfx; Wix; Wox; Wx2c] (cols zero-padded)
    # wh_ref : (3H, H)       stacked [Wfh; Wih; Woh]  (candidate has no recurrence)
    # bg_ref : (4H, S*B)     gate-bias slab pre-tiled over time (PyTorch batch-
    #                        broadcast quirk: bias value indexed by batch column)
    # wpt_ref: (H, C_pad)    output projection, transposed + class-padded
    # bp_ref : (1, C_pad)    per-class output bias row
    # out_ref: (B, C_pad)    logits, batch-major -> lane-dense unmasked stores
    # zx_scr : (S, 4H, B)    VMEM staging for per-step gate-major slabs
    S, _, B = zx_scr.shape
    H3, H = wh_ref.shape

    # (1) Every x-side projection in one lane-dense MXU pass + one dense bias add,
    #     entirely off the serial c-dependent chain.
    zx_all = jnp.dot(wx_ref[...], x_ref[...],
                     preferred_element_type=jnp.float32) + bg_ref[...]      # (4H, S*B)

    # (2) Candidate gate has no recurrent term -> lane-dense sigmoid up front.
    cand_all = jax.nn.sigmoid(zx_all[H3:, :])                               # (H, S*B)

    # (8) One-time unpack (all lane work happens here, off the chain) into
    #     gate-major (4H, B) slabs; rows 3H:4H already hold the candidate gate.
    for t in range(S):
        cols = slice(t * B, (t + 1) * B)
        zx_scr[t] = jnp.concatenate([zx_all[:H3, cols], cand_all[:, cols]], axis=0)

    wh = wh_ref[...]
    c = jnp.zeros((H, B), jnp.float32)
    o_last = jnp.zeros((H, B), jnp.float32)
    for t in range(S):              # static unroll; only f/i/o sit on the c-chain
        zt = zx_scr[t]                                                      # (4H, B) plain load
        pre = zt[:H3, :] + jnp.dot(wh, c, preferred_element_type=jnp.float32)
        g = jax.nn.sigmoid(pre)                                             # (3H, B), one EUP slab
        f = g[0 * H:1 * H, :]
        i = g[1 * H:2 * H, :]
        c = zt[H3:, :] * i + c * f          # candidate (already sigmoided) * i + c * f
        if t == S - 1:
            o_last = g[2 * H:3 * H, :]      # (3) only the last step's o is needed

    # (3) h never feeds the recurrence: single tanh pass after the loop.
    h = jnp.tanh(c) * o_last                                                # (H, B)

    # (4) Lane-dense (B, C_pad) logits: contract dim 0 of both operands (TN matmul).
    logits = jax.lax.dot_general(
        h, wpt_ref[...], (((0,), (0,)), ((), ())),
        preferred_element_type=jnp.float32)                                 # (B, C_pad)
    out_ref[...] = logits + bp_ref[...]


def peep_lstm_forward(x_digits, params):
    """x_digits: (B, S, 1) float/int digit ids. Returns (B, num_classes) logits."""
    emb_table = params["embedding"]
    B, S, _ = x_digits.shape
    x_idx = x_digits.astype(jnp.int32).squeeze(-1)             # x.long().squeeze()
    x_emb = emb_table[x_idx]                                   # (B, S, E)  XLA gather glue
    E = x_emb.shape[-1]
    H = params["wfh"].shape[0]
    C = params["wp"].shape[0]
    # LOUD: the PyTorch module's shapes only line up when batch == hidden, and its
    # gate bias is broadcast along the batch axis (a bug we faithfully reproduce).
    assert B == H, "peepLSTM (as written in PyTorch) requires batch_size == hidden_dim"

    E_pad = max(8, -(-E // 8) * 8)
    C_pad = max(128, -(-C // 128) * 128)

    # Flattened input so the kernel does ONE (4H, E_pad) @ (E_pad, S*B) matmul:
    # column t*B + b holds x_emb[b, t, :].
    x_esb = jnp.transpose(x_emb, (2, 1, 0))                    # (E, S, B)
    x_flat = jnp.pad(x_esb, ((0, E_pad - E), (0, 0), (0, 0))).reshape(E_pad, S * B)

    # Fused x-side weights (4H, E_pad): [f; i; o; x2c], zero-padded columns.
    wx = jnp.concatenate(
        [params["wfx"], params["wix"], params["wox"], params["wx2c"]], axis=0)
    wx_pad = jnp.pad(wx, ((0, 0), (0, E_pad - E)))

    # Fused recurrent weights for f/i/o only (candidate has no recurrent term).
    wh3 = jnp.concatenate([params["wfh"], params["wih"], params["woh"]], axis=0)   # (3H, H)

    # Gate-bias slab (PyTorch quirk: (H,B)+(H,) broadcasts the bias along the
    # *batch* column), tiled over time so the kernel does one dense add.
    def slab(b):                                               # b: (1, H), H == B
        return jnp.broadcast_to(b.reshape(1, H), (H, B))
    bg = jnp.concatenate(
        [slab(params["bf"]), slab(params["bi"]),
         slab(params["bo"]), slab(params["bx2c"])], axis=0)    # (4H, B)
    bg_tiled = jnp.tile(bg, (1, S))                            # (4H, S*B)

    # Transposed + class-padded projection so the kernel output is lane-dense.
    wpt_pad = jnp.pad(params["wp"].T, ((0, 0), (0, C_pad - C)))              # (H, C_pad)
    bp_row = jnp.pad(params["bp"].reshape(1, C), ((0, 0), (0, C_pad - C)))   # (1, C_pad)

    out_bc = pl.pallas_call(
        peep_lstm_kernel,
        out_shape=jax.ShapeDtypeStruct((B, C_pad), jnp.float32),
        scratch_shapes=[pltpu.VMEM((S, 4 * H, B), jnp.float32)],
    )(x_flat, wx_pad, wh3, bg_tiled, wpt_pad, bp_row)

    return out_bc[:, :C]                                       # (B, C)


def init_params(key, H, E, C, num_digits):
    """Deterministic init matching the PyTorch module's __init__ distributions."""
    ks = jax.random.split(key, 9)

    def kaiming(k, shape):  # kaiming_normal_: std = sqrt(2 / fan_in), fan_in = shape[1]
        return jax.random.normal(k, shape, jnp.float32) * jnp.sqrt(2.0 / shape[1])

    return dict(
        wfx=kaiming(ks[0], (H, E)), wfh=kaiming(ks[1], (H, H)), bf=jnp.zeros((1, H), jnp.float32),
        wix=kaiming(ks[2], (H, E)), wih=kaiming(ks[3], (H, H)), bi=jnp.zeros((1, H), jnp.float32),
        wox=kaiming(ks[4], (H, E)), woh=kaiming(ks[5], (H, H)), bo=jnp.zeros((1, H), jnp.float32),
        wx2c=kaiming(ks[6], (H, E)), bx2c=jnp.zeros((1, H), jnp.float32),
        wp=kaiming(ks[7], (C, H)), bp=jnp.zeros((1, C), jnp.float32),
        embedding=jax.random.normal(ks[8], (num_digits, E), jnp.float32),  # nn.Embedding ~ N(0,1)
    )


def ref_forward(x_digits, params):
    """Pure-JAX reference mirroring the PyTorch forward exactly."""
    x_idx = x_digits.astype(jnp.int32).squeeze(-1)
    x_emb = params["embedding"][x_idx]                         # (B, S, E)
    B, S, E = x_emb.shape
    H = params["wfh"].shape[0]
    c = jnp.zeros((H, B), jnp.float32)
    h = None
    for t in range(S):
        xt = x_emb[:, t].T                                     # (E, B)
        f = jax.nn.sigmoid(params["wfx"] @ xt + params["wfh"] @ c + params["bf"])
        i = jax.nn.sigmoid(params["wix"] @ xt + params["wih"] @ c + params["bi"])
        o = jax.nn.sigmoid(params["wox"] @ xt + params["woh"] @ c + params["bo"])
        cand = jax.nn.sigmoid(params["wx2c"] @ xt + params["bx2c"])
        c = cand * i + c * f
        h = jnp.tanh(c) * o
    return (params["wp"] @ h).T + params["bp"]


if __name__ == "__main__":
    BATCH = 32          # must equal hidden_dim (constraint of the original module)
    HIDDEN = 32
    SEQ = 8
    EMB = 6
    NUM_CLASSES = 10
    NUM_DIGITS = 3

    key = jax.random.PRNGKey(0)
    pkey, xkey = jax.random.split(key)
    params = init_params(pkey, HIDDEN, EMB, NUM_CLASSES, NUM_DIGITS)

    x = jax.random.randint(xkey, (BATCH, SEQ, 1), 0, NUM_DIGITS).astype(jnp.float32)

    out = peep_lstm_forward(x, params)
    out = jax.block_until_ready(out)

    ref = ref_forward(x, params)
    assert out.shape == (BATCH, NUM_CLASSES), out.shape
    err = float(jnp.max(jnp.abs(out - ref)))
    assert jnp.allclose(out, ref, atol=1e-4, rtol=1e-4), err
    print("KERNEL_OK")
</pallas_src>

<mosaic_0001>
module attributes {stable_mosaic.version = 11 : i64} {
  func.func @peep_lstm_kernel(%arg0: memref<8x256xf32, #tpu.memory_space<vmem>>, %arg1: memref<128x8xf32, #tpu.memory_space<vmem>>, %arg2: memref<96x32xf32, #tpu.memory_space<vmem>>, %arg3: memref<128x256xf32, #tpu.memory_space<vmem>>, %arg4: memref<32x128xf32, #tpu.memory_space<vmem>>, %arg5: memref<1x128xf32, #tpu.memory_space<vmem>>, %arg6: memref<32x128xf32, #tpu.memory_space<vmem>>, %arg7: memref<8x128x32xf32, #tpu.memory_space<vmem>>) attributes {dimension_semantics = [], scalar_prefetch = 0 : i64, scratch_operands = 1 : i64, tpu.core_type = #tpu.core_type<tc>} {
    %c0 = arith.constant 0 : index
    %c0_0 = arith.constant 0 : index
    %0 = vector.load %arg1[%c0, %c0_0] : memref<128x8xf32, #tpu.memory_space<vmem>>, vector<128x8xf32>
    %c0_1 = arith.constant 0 : index
    %c0_2 = arith.constant 0 : index
    %1 = vector.load %arg0[%c0_1, %c0_2] : memref<8x256xf32, #tpu.memory_space<vmem>>, vector<8x256xf32>
    %cst = arith.constant dense<0.000000e+00> : vector<128x256xf32>
    %2 = tpu.matmul %0, %1, %cst {dimension_numbers = #tpu.dot_dimension_numbers<[1], [0], [0], [1], [0, 0, 1, 1], [], []>} : vector<128x8xf32>, vector<8x256xf32>, vector<128x256xf32> -> vector<128x256xf32>
    %c0_3 = arith.constant 0 : index
    %c0_4 = arith.constant 0 : index
    %3 = vector.load %arg3[%c0_3, %c0_4] : memref<128x256xf32, #tpu.memory_space<vmem>>, vector<128x256xf32>
    %4 = arith.addf %2, %3 : vector<128x256xf32>
    %5 = vector.extract_strided_slice %4 {offsets = [96, 0], sizes = [32, 256], strides = [1, 1]} : vector<128x256xf32> to vector<32x256xf32>
    %6 = arith.negf %5 : vector<32x256xf32>
    %7 = math.exp %6 : vector<32x256xf32>
    %cst_5 = arith.constant 1.000000e+00 : f32
    %8 = vector.broadcast %cst_5 : f32 to vector<32x256xf32>
    %9 = arith.addf %8, %7 : vector<32x256xf32>
    %10 = arith.divf %8, %9 : vector<32x256xf32>
    %11 = vector.extract_strided_slice %4 {offsets = [0, 0], sizes = [96, 32], strides = [1, 1]} : vector<128x256xf32> to vector<96x32xf32>
    %12 = vector.extract_strided_slice %10 {offsets = [0, 0], sizes = [32, 32], strides = [1, 1]} : vector<32x256xf32> to vector<32x32xf32>
    %13 = tpu.concatenate %11, %12 in 0 : vector<96x32xf32>, vector<32x32xf32> -> vector<128x32xf32>
    %c0_6 = arith.constant 0 : index
    %c0_7 = arith.constant 0 : index
    %c0_8 = arith.constant 0 : index
    %14 = vector.load %arg7[%c0_6, %c0_7, %c0_8] : memref<8x128x32xf32, #tpu.memory_space<vmem>>, vector<1x128x32xf32>
    %15 = vector.shape_cast %14 : vector<1x128x32xf32> to vector<128x32xf32>
    %16 = vector.shape_cast %13 : vector<128x32xf32> to vector<1x128x32xf32>
    tpu.vector_store %arg7[%c0_6, %c0_7, %c0_8], %16 {strides = array<i32>} : memref<8x128x32xf32, #tpu.memory_space<vmem>>, vector<1x128x32xf32>,
    %17 = vector.extract_strided_slice %4 {offsets = [0, 32], sizes = [96, 32], strides = [1, 1]} : vector<128x256xf32> to vector<96x32xf32>
    %18 = vector.extract_strided_slice %10 {offsets = [0, 32], sizes = [32, 32], strides = [1, 1]} : vector<32x256xf32> to vector<32x32xf32>
    %19 = tpu.concatenate %17, %18 in 0 : vector<96x32xf32>, vector<32x32xf32> -> vector<128x32xf32>
    %c1 = arith.constant 1 : index
    %c0_9 = arith.constant 0 : index
    %c0_10 = arith.constant 0 : index
    %20 = vector.load %arg7[%c1, %c0_9, %c0_10] : memref<8x128x32xf32, #tpu.memory_space<vmem>>, vector<1x128x32xf32>
    %21 = vector.shape_cast %20 : vector<1x128x32xf32> to vector<128x32xf32>
    %22 = vector.shape_cast %19 : vector<128x32xf32> to vector<1x128x32xf32>
    tpu.vector_store %arg7[%c1, %c0_9, %c0_10], %22 {strides = array<i32>} : memref<8x128x32xf32, #tpu.memory_space<vmem>>, vector<1x128x32xf32>,
    %23 = vector.extract_strided_slice %4 {offsets = [0, 64], sizes = [96, 32], strides = [1, 1]} : vector<128x256xf32> to vector<96x32xf32>
    %24 = vector.extract_strided_slice %10 {offsets = [0, 64], sizes = [32, 32], strides = [1, 1]} : vector<32x256xf32> to vector<32x32xf32>
    %25 = tpu.concatenate %23, %24 in 0 : vector<96x32xf32>, vector<32x32xf32> -> vector<128x32xf32>
    %c2 = arith.constant 2 : index
    %c0_11 = arith.constant 0 : index
    %c0_12 = arith.constant 0 : index
    %26 = vector.load %arg7[%c2, %c0_11, %c0_12] : memref<8x128x32xf32, #tpu.memory_space<vmem>>, vector<1x128x32xf32>
    %27 = vector.shape_cast %26 : vector<1x128x32xf32> to vector<128x32xf32>
    %28 = vector.shape_cast %25 : vector<128x32xf32> to vector<1x128x32xf32>
    tpu.vector_store %arg7[%c2, %c0_11, %c0_12], %28 {strides = array<i32>} : memref<8x128x32xf32, #tpu.memory_space<vmem>>, vector<1x128x32xf32>,
    %29 = vector.extract_strided_slice %4 {offsets = [0, 96], sizes = [96, 32], strides = [1, 1]} : vector<128x256xf32> to vector<96x32xf32>
    %30 = vector.extract_strided_slice %10 {offsets = [0, 96], sizes = [32, 32], strides = [1, 1]} : vector<32x256xf32> to vector<32x32xf32>
    %31 = tpu.concatenate %29, %30 in 0 : vector<96x32xf32>, vector<32x32xf32> -> vector<128x32xf32>
    %c3 = arith.constant 3 : index
    %c0_13 = arith.constant 0 : index
    %c0_14 = arith.constant 0 : index
    %32 = vector.load %arg7[%c3, %c0_13, %c0_14] : memref<8x128x32xf32, #tpu.memory_space<vmem>>, vector<1x128x32xf32>
    %33 = vector.shape_cast %32 : vector<1x128x32xf32> to vector<128x32xf32>
    %34 = vector.shape_cast %31 : vector<128x32xf32> to vector<1x128x32xf32>
    tpu.vector_store %arg7[%c3, %c0_13, %c0_14], %34 {strides = array<i32>} : memref<8x128x32xf32, #tpu.memory_space<vmem>>, vector<1x128x32xf32>,
    %35 = vector.extract_strided_slice %4 {offsets = [0, 128], sizes = [96, 32], strides = [1, 1]} : vector<128x256xf32> to vector<96x32xf32>
    %36 = vector.extract_strided_slice %10 {offsets = [0, 128], sizes = [32, 32], strides = [1, 1]} : vector<32x256xf32> to vector<32x32xf32>
    %37 = tpu.concatenate %35, %36 in 0 : vector<96x32xf32>, vector<32x32xf32> -> vector<128x32xf32>
    %c4 = arith.constant 4 : index
    %c0_15 = arith.constant 0 : index
    %c0_16 = arith.constant 0 : index
    %38 = vector.load %arg7[%c4, %c0_15, %c0_16] : memref<8x128x32xf32, #tpu.memory_space<vmem>>, vector<1x128x32xf32>
    %39 = vector.shape_cast %38 : vector<1x128x32xf32> to vector<128x32xf32>
    %40 = vector.shape_cast %37 : vector<128x32xf32> to vector<1x128x32xf32>
    tpu.vector_store %arg7[%c4, %c0_15, %c0_16], %40 {strides = array<i32>} : memref<8x128x32xf32, #tpu.memory_space<vmem>>, vector<1x128x32xf32>,
    %41 = vector.extract_strided_slice %4 {offsets = [0, 160], sizes = [96, 32], strides = [1, 1]} : vector<128x256xf32> to vector<96x32xf32>
    %42 = vector.extract_strided_slice %10 {offsets = [0, 160], sizes = [32, 32], strides = [1, 1]} : vector<32x256xf32> to vector<32x32xf32>
    %43 = tpu.concatenate %41, %42 in 0 : vector<96x32xf32>, vector<32x32xf32> -> vector<128x32xf32>
    %c5 = arith.constant 5 : index
    %c0_17 = arith.constant 0 : index
    %c0_18 = arith.constant 0 : index
    %44 = vector.load %arg7[%c5, %c0_17, %c0_18] : memref<8x128x32xf32, #tpu.memory_space<vmem>>, vector<1x128x32xf32>
    %45 = vector.shape_cast %44 : vector<1x128x32xf32> to vector<128x32xf32>
    %46 = vector.shape_cast %43 : vector<128x32xf32> to vector<1x128x32xf32>
    tpu.vector_store %arg7[%c5, %c0_17, %c0_18], %46 {strides = array<i32>} : memref<8x128x32xf32, #tpu.memory_space<vmem>>, vector<1x128x32xf32>,
    %47 = vector.extract_strided_slice %4 {offsets = [0, 192], sizes = [96, 32], strides = [1, 1]} : vector<128x256xf32> to vector<96x32xf32>
    %48 = vector.extract_strided_slice %10 {offsets = [0, 192], sizes = [32, 32], strides = [1, 1]} : vector<32x256xf32> to vector<32x32xf32>
    %49 = tpu.concatenate %47, %48 in 0 : vector<96x32xf32>, vector<32x32xf32> -> vector<128x32xf32>
    %c6 = arith.constant 6 : index
    %c0_19 = arith.constant 0 : index
    %c0_20 = arith.constant 0 : index
    %50 = vector.load %arg7[%c6, %c0_19, %c0_20] : memref<8x128x32xf32, #tpu.memory_space<vmem>>, vector<1x128x32xf32>
    %51 = vector.shape_cast %50 : vector<1x128x32xf32> to vector<128x32xf32>
    %52 = vector.shape_cast %49 : vector<128x32xf32> to vector<1x128x32xf32>
    tpu.vector_store %arg7[%c6, %c0_19, %c0_20], %52 {strides = array<i32>} : memref<8x128x32xf32, #tpu.memory_space<vmem>>, vector<1x128x32xf32>,
    %53 = vector.extract_strided_slice %4 {offsets = [0, 224], sizes = [96, 32], strides = [1, 1]} : vector<128x256xf32> to vector<96x32xf32>
    %54 = vector.extract_strided_slice %10 {offsets = [0, 224], sizes = [32, 32], strides = [1, 1]} : vector<32x256xf32> to vector<32x32xf32>
    %55 = tpu.concatenate %53, %54 in 0 : vector<96x32xf32>, vector<32x32xf32> -> vector<128x32xf32>
    %c7 = arith.constant 7 : index
    %c0_21 = arith.constant 0 : index
    %c0_22 = arith.constant 0 : index
    %56 = vector.load %arg7[%c7, %c0_21, %c0_22] : memref<8x128x32xf32, #tpu.memory_space<vmem>>, vector<1x128x32xf32>
    %57 = vector.shape_cast %56 : vector<1x128x32xf32> to vector<128x32xf32>
    %58 = vector.shape_cast %55 : vector<128x32xf32> to vector<1x128x32xf32>
    tpu.vector_store %arg7[%c7, %c0_21, %c0_22], %58 {strides = array<i32>} : memref<8x128x32xf32, #tpu.memory_space<vmem>>, vector<1x128x32xf32>,
    %c0_23 = arith.constant 0 : index
    %c0_24 = arith.constant 0 : index
    %59 = vector.load %arg2[%c0_23, %c0_24] : memref<96x32xf32, #tpu.memory_space<vmem>>, vector<96x32xf32>
    %cst_25 = arith.constant 0.000000e+00 : f32
    %60 = vector.broadcast %cst_25 : f32 to vector<32x32xf32>
    %c0_26 = arith.constant 0 : index
    %c0_27 = arith.constant 0 : index
    %c0_28 = arith.constant 0 : index
    %61 = vector.load %arg7[%c0_26, %c0_27, %c0_28] : memref<8x128x32xf32, #tpu.memory_space<vmem>>, vector<1x128x32xf32>
    %62 = vector.shape_cast %61 : vector<1x128x32xf32> to vector<128x32xf32>
    %63 = vector.extract_strided_slice %62 {offsets = [0, 0], sizes = [96, 32], strides = [1, 1]} : vector<128x32xf32> to vector<96x32xf32>
    %cst_29 = arith.constant dense<0.000000e+00> : vector<96x32xf32>
    %64 = tpu.matmul %59, %60, %cst_29 {dimension_numbers = #tpu.dot_dimension_numbers<[1], [0], [0], [1], [0, 0, 1, 1], [], []>} : vector<96x32xf32>, vector<32x32xf32>, vector<96x32xf32> -> vector<96x32xf32>
    %65 = arith.addf %63, %64 : vector<96x32xf32>
    %66 = arith.negf %65 : vector<96x32xf32>
    %67 = math.exp %66 : vector<96x32xf32>
    %cst_30 = arith.constant 1.000000e+00 : f32
    %68 = vector.broadcast %cst_30 : f32 to vector<96x32xf32>
    %69 = arith.addf %68, %67 : vector<96x32xf32>
    %70 = arith.divf %68, %69 : vector<96x32xf32>
    %71 = vector.extract_strided_slice %70 {offsets = [0, 0], sizes = [32, 32], strides = [1, 1]} : vector<96x32xf32> to vector<32x32xf32>
    %72 = vector.extract_strided_slice %70 {offsets = [32, 0], sizes = [32, 32], strides = [1, 1]} : vector<96x32xf32> to vector<32x32xf32>
    %73 = vector.extract_strided_slice %62 {offsets = [96, 0], sizes = [32, 32], strides = [1, 1]} : vector<128x32xf32> to vector<32x32xf32>
    %74 = arith.mulf %73, %72 : vector<32x32xf32>
    %75 = arith.mulf %60, %71 : vector<32x32xf32>
    %76 = arith.addf %74, %75 : vector<32x32xf32>
    %c1_31 = arith.constant 1 : index
    %c0_32 = arith.constant 0 : index
    %c0_33 = arith.constant 0 : index
    %77 = vector.load %arg7[%c1_31, %c0_32, %c0_33] : memref<8x128x32xf32, #tpu.memory_space<vmem>>, vector<1x128x32xf32>
    %78 = vector.shape_cast %77 : vector<1x128x32xf32> to vector<128x32xf32>
    %79 = vector.extract_strided_slice %78 {offsets = [0, 0], sizes = [96, 32], strides = [1, 1]} : vector<128x32xf32> to vector<96x32xf32>
    %cst_34 = arith.constant dense<0.000000e+00> : vector<96x32xf32>
    %80 = tpu.matmul %59, %76, %cst_34 {dimension_numbers = #tpu.dot_dimension_numbers<[1], [0], [0], [1], [0, 0, 1, 1], [], []>} : vector<96x32xf32>, vector<32x32xf32>, vector<96x32xf32> -> vector<96x32xf32>
    %81 = arith.addf %79, %80 : vector<96x32xf32>
    %82 = arith.negf %81 : vector<96x32xf32>
    %83 = math.exp %82 : vector<96x32xf32>
    %cst_35 = arith.constant 1.000000e+00 : f32
    %84 = vector.broadcast %cst_35 : f32 to vector<96x32xf32>
    %85 = arith.addf %84, %83 : vector<96x32xf32>
    %86 = arith.divf %84, %85 : vector<96x32xf32>
    %87 = vector.extract_strided_slice %86 {offsets = [0, 0], sizes = [32, 32], strides = [1, 1]} : vector<96x32xf32> to vector<32x32xf32>
    %88 = vector.extract_strided_slice %86 {offsets = [32, 0], sizes = [32, 32], strides = [1, 1]} : vector<96x32xf32> to vector<32x32xf32>
    %89 = vector.extract_strided_slice %78 {offsets = [96, 0], sizes = [32, 32], strides = [1, 1]} : vector<128x32xf32> to vector<32x32xf32>
    %90 = arith.mulf %89, %88 : vector<32x32xf32>
    %91 = arith.mulf %76, %87 : vector<32x32xf32>
    %92 = arith.addf %90, %91 : vector<32x32xf32>
    %c2_36 = arith.constant 2 : index
    %c0_37 = arith.constant 0 : index
    %c0_38 = arith.constant 0 : index
    %93 = vector.load %arg7[%c2_36, %c0_37, %c0_38] : memref<8x128x32xf32, #tpu.memory_space<vmem>>, vector<1x128x32xf32>
    %94 = vector.shape_cast %93 : vector<1x128x32xf32> to vector<128x32xf32>
    %95 = vector.extract_strided_slice %94 {offsets = [0, 0], sizes = [96, 32], strides = [1, 1]} : vector<128x32xf32> to vector<96x32xf32>
    %cst_39 = arith.constant dense<0.000000e+00> : vector<96x32xf32>
    %96 = tpu.matmul %59, %92, %cst_39 {dimension_numbers = #tpu.dot_dimension_numbers<[1], [0], [0], [1], [0, 0, 1, 1], [], []>} : vector<96x32xf32>, vector<32x32xf32>, vector<96x32xf32> -> vector<96x32xf32>
    %97 = arith.addf %95, %96 : vector<96x32xf32>
    %98 = arith.negf %97 : vector<96x32xf32>
    %99 = math.exp %98 : vector<96x32xf32>
    %cst_40 = arith.constant 1.000000e+00 : f32
    %100 = vector.broadcast %cst_40 : f32 to vector<96x32xf32>
    %101 = arith.addf %100, %99 : vector<96x32xf32>
    %102 = arith.divf %100, %101 : vector<96x32xf32>
    %103 = vector.extract_strided_slice %102 {offsets = [0, 0], sizes = [32, 32], strides = [1, 1]} : vector<96x32xf32> to vector<32x32xf32>
    %104 = vector.extract_strided_slice %102 {offsets = [32, 0], sizes = [32, 32], strides = [1, 1]} : vector<96x32xf32> to vector<32x32xf32>
    %105 = vector.extract_strided_slice %94 {offsets = [96, 0], sizes = [32, 32], strides = [1, 1]} : vector<128x32xf32> to vector<32x32xf32>
    %106 = arith.mulf %105, %104 : vector<32x32xf32>
    %107 = arith.mulf %92, %103 : vector<32x32xf32>
    %108 = arith.addf %106, %107 : vector<32x32xf32>
    %c3_41 = arith.constant 3 : index
    %c0_42 = arith.constant 0 : index
    %c0_43 = arith.constant 0 : index
    %109 = vector.load %arg7[%c3_41, %c0_42, %c0_43] : memref<8x128x32xf32, #tpu.memory_space<vmem>>, vector<1x128x32xf32>
    %110 = vector.shape_cast %109 : vector<1x128x32xf32> to vector<128x32xf32>
    %111 = vector.extract_strided_slice %110 {offsets = [0, 0], sizes = [96, 32], strides = [1, 1]} : vector<128x32xf32> to vector<96x32xf32>
    %cst_44 = arith.constant dense<0.000000e+00> : vector<96x32xf32>
    %112 = tpu.matmul %59, %108, %cst_44 {dimension_numbers = #tpu.dot_dimension_numbers<[1], [0], [0], [1], [0, 0, 1, 1], [], []>} : vector<96x32xf32>, vector<32x32xf32>, vector<96x32xf32> -> vector<96x32xf32>
    %113 = arith.addf %111, %112 : vector<96x32xf32>
    %114 = arith.negf %113 : vector<96x32xf32>
    %115 = math.exp %114 : vector<96x32xf32>
    %cst_45 = arith.constant 1.000000e+00 : f32
    %116 = vector.broadcast %cst_45 : f32 to vector<96x32xf32>
    %117 = arith.addf %116, %115 : vector<96x32xf32>
    %118 = arith.divf %116, %117 : vector<96x32xf32>
    %119 = vector.extract_strided_slice %118 {offsets = [0, 0], sizes = [32, 32], strides = [1, 1]} : vector<96x32xf32> to vector<32x32xf32>
    %120 = vector.extract_strided_slice %118 {offsets = [32, 0], sizes = [32, 32], strides = [1, 1]} : vector<96x32xf32> to vector<32x32xf32>
    %121 = vector.extract_strided_slice %110 {offsets = [96, 0], sizes = [32, 32], strides = [1, 1]} : vector<128x32xf32> to vector<32x32xf32>
    %122 = arith.mulf %121, %120 : vector<32x32xf32>
    %123 = arith.mulf %108, %119 : vector<32x32xf32>
    %124 = arith.addf %122, %123 : vector<32x32xf32>
    %c4_46 = arith.constant 4 : index
    %c0_47 = arith.constant 0 : index
    %c0_48 = arith.constant 0 : index
    %125 = vector.load %arg7[%c4_46, %c0_47, %c0_48] : memref<8x128x32xf32, #tpu.memory_space<vmem>>, vector<1x128x32xf32>
    %126 = vector.shape_cast %125 : vector<1x128x32xf32> to vector<128x32xf32>
    %127 = vector.extract_strided_slice %126 {offsets = [0, 0], sizes = [96, 32], strides = [1, 1]} : vector<128x32xf32> to vector<96x32xf32>
    %cst_49 = arith.constant dense<0.000000e+00> : vector<96x32xf32>
    %128 = tpu.matmul %59, %124, %cst_49 {dimension_numbers = #tpu.dot_dimension_numbers<[1], [0], [0], [1], [0, 0, 1, 1], [], []>} : vector<96x32xf32>, vector<32x32xf32>, vector<96x32xf32> -> vector<96x32xf32>
    %129 = arith.addf %127, %128 : vector<96x32xf32>
    %130 = arith.negf %129 : vector<96x32xf32>
    %131 = math.exp %130 : vector<96x32xf32>
    %cst_50 = arith.constant 1.000000e+00 : f32
    %132 = vector.broadcast %cst_50 : f32 to vector<96x32xf32>
    %133 = arith.addf %132, %131 : vector<96x32xf32>
    %134 = arith.divf %132, %133 : vector<96x32xf32>
    %135 = vector.extract_strided_slice %134 {offsets = [0, 0], sizes = [32, 32], strides = [1, 1]} : vector<96x32xf32> to vector<32x32xf32>
    %136 = vector.extract_strided_slice %134 {offsets = [32, 0], sizes = [32, 32], strides = [1, 1]} : vector<96x32xf32> to vector<32x32xf32>
    %137 = vector.extract_strided_slice %126 {offsets = [96, 0], sizes = [32, 32], strides = [1, 1]} : vector<128x32xf32> to vector<32x32xf32>
    %138 = arith.mulf %137, %136 : vector<32x32xf32>
    %139 = arith.mulf %124, %135 : vector<32x32xf32>
    %140 = arith.addf %138, %139 : vector<32x32xf32>
    %c5_51 = arith.constant 5 : index
    %c0_52 = arith.constant 0 : index
    %c0_53 = arith.constant 0 : index
    %141 = vector.load %arg7[%c5_51, %c0_52, %c0_53] : memref<8x128x32xf32, #tpu.memory_space<vmem>>, vector<1x128x32xf32>
    %142 = vector.shape_cast %141 : vector<1x128x32xf32> to vector<128x32xf32>
    %143 = vector.extract_strided_slice %142 {offsets = [0, 0], sizes = [96, 32], strides = [1, 1]} : vector<128x32xf32> to vector<96x32xf32>
    %cst_54 = arith.constant dense<0.000000e+00> : vector<96x32xf32>
    %144 = tpu.matmul %59, %140, %cst_54 {dimension_numbers = #tpu.dot_dimension_numbers<[1], [0], [0], [1], [0, 0, 1, 1], [], []>} : vector<96x32xf32>, vector<32x32xf32>, vector<96x32xf32> -> vector<96x32xf32>
    %145 = arith.addf %143, %144 : vector<96x32xf32>
    %146 = arith.negf %145 : vector<96x32xf32>
    %147 = math.exp %146 : vector<96x32xf32>
    %cst_55 = arith.constant 1.000000e+00 : f32
    %148 = vector.broadcast %cst_55 : f32 to vector<96x32xf32>
    %149 = arith.addf %148, %147 : vector<96x32xf32>
    %150 = arith.divf %148, %149 : vector<96x32xf32>
    %151 = vector.extract_strided_slice %150 {offsets = [0, 0], sizes = [32, 32], strides = [1, 1]} : vector<96x32xf32> to vector<32x32xf32>
    %152 = vector.extract_strided_slice %150 {offsets = [32, 0], sizes = [32, 32], strides = [1, 1]} : vector<96x32xf32> to vector<32x32xf32>
    %153 = vector.extract_strided_slice %142 {offsets = [96, 0], sizes = [32, 32], strides = [1, 1]} : vector<128x32xf32> to vector<32x32xf32>
    %154 = arith.mulf %153, %152 : vector<32x32xf32>
    %155 = arith.mulf %140, %151 : vector<32x32xf32>
    %156 = arith.addf %154, %155 : vector<32x32xf32>
    %c6_56 = arith.constant 6 : index
    %c0_57 = arith.constant 0 : index
    %c0_58 = arith.constant 0 : index
    %157 = vector.load %arg7[%c6_56, %c0_57, %c0_58] : memref<8x128x32xf32, #tpu.memory_space<vmem>>, vector<1x128x32xf32>
    %158 = vector.shape_cast %157 : vector<1x128x32xf32> to vector<128x32xf32>
    %159 = vector.extract_strided_slice %158 {offsets = [0, 0], sizes = [96, 32], strides = [1, 1]} : vector<128x32xf32> to vector<96x32xf32>
    %cst_59 = arith.constant dense<0.000000e+00> : vector<96x32xf32>
    %160 = tpu.matmul %59, %156, %cst_59 {dimension_numbers = #tpu.dot_dimension_numbers<[1], [0], [0], [1], [0, 0, 1, 1], [], []>} : vector<96x32xf32>, vector<32x32xf32>, vector<96x32xf32> -> vector<96x32xf32>
    %161 = arith.addf %159, %160 : vector<96x32xf32>
    %162 = arith.negf %161 : vector<96x32xf32>
    %163 = math.exp %162 : vector<96x32xf32>
    %cst_60 = arith.constant 1.000000e+00 : f32
    %164 = vector.broadcast %cst_60 : f32 to vector<96x32xf32>
    %165 = arith.addf %164, %163 : vector<96x32xf32>
    %166 = arith.divf %164, %165 : vector<96x32xf32>
    %167 = vector.extract_strided_slice %166 {offsets = [0, 0], sizes = [32, 32], strides = [1, 1]} : vector<96x32xf32> to vector<32x32xf32>
    %168 = vector.extract_strided_slice %166 {offsets = [32, 0], sizes = [32, 32], strides = [1, 1]} : vector<96x32xf32> to vector<32x32xf32>
    %169 = vector.extract_strided_slice %158 {offsets = [96, 0], sizes = [32, 32], strides = [1, 1]} : vector<128x32xf32> to vector<32x32xf32>
    %170 = arith.mulf %169, %168 : vector<32x32xf32>
    %171 = arith.mulf %156, %167 : vector<32x32xf32>
    %172 = arith.addf %170, %171 : vector<32x32xf32>
    %c7_61 = arith.constant 7 : index
    %c0_62 = arith.constant 0 : index
    %c0_63 = arith.constant 0 : index
    %173 = vector.load %arg7[%c7_61, %c0_62, %c0_63] : memref<8x128x32xf32, #tpu.memory_space<vmem>>, vector<1x128x32xf32>
    %174 = vector.shape_cast %173 : vector<1x128x32xf32> to vector<128x32xf32>
    %175 = vector.extract_strided_slice %174 {offsets = [0, 0], sizes = [96, 32], strides = [1, 1]} : vector<128x32xf32> to vector<96x32xf32>
    %cst_64 = arith.constant dense<0.000000e+00> : vector<96x32xf32>
    %176 = tpu.matmul %59, %172, %cst_64 {dimension_numbers = #tpu.dot_dimension_numbers<[1], [0], [0], [1], [0, 0, 1, 1], [], []>} : vector<96x32xf32>, vector<32x32xf32>, vector<96x32xf32> -> vector<96x32xf32>
    %177 = arith.addf %175, %176 : vector<96x32xf32>
    %178 = arith.negf %177 : vector<96x32xf32>
    %179 = math.exp %178 : vector<96x32xf32>
    %cst_65 = arith.constant 1.000000e+00 : f32
    %180 = vector.broadcast %cst_65 : f32 to vector<96x32xf32>
    %181 = arith.addf %180, %179 : vector<96x32xf32>
    %182 = arith.divf %180, %181 : vector<96x32xf32>
    %183 = vector.extract_strided_slice %182 {offsets = [0, 0], sizes = [32, 32], strides = [1, 1]} : vector<96x32xf32> to vector<32x32xf32>
    %184 = vector.extract_strided_slice %182 {offsets = [32, 0], sizes = [32, 32], strides = [1, 1]} : vector<96x32xf32> to vector<32x32xf32>
    %185 = vector.extract_strided_slice %174 {offsets = [96, 0], sizes = [32, 32], strides = [1, 1]} : vector<128x32xf32> to vector<32x32xf32>
    %186 = arith.mulf %185, %184 : vector<32x32xf32>
    %187 = arith.mulf %172, %183 : vector<32x32xf32>
    %188 = arith.addf %186, %187 : vector<32x32xf32>
    %189 = vector.extract_strided_slice %182 {offsets = [64, 0], sizes = [32, 32], strides = [1, 1]} : vector<96x32xf32> to vector<32x32xf32>
    %190 = math.tanh %188 : vector<32x32xf32>
    %191 = arith.mulf %190, %189 : vector<32x32xf32>
    %c0_66 = arith.constant 0 : index
    %c0_67 = arith.constant 0 : index
    %192 = vector.load %arg4[%c0_66, %c0_67] : memref<32x128xf32, #tpu.memory_space<vmem>>, vector<32x128xf32>
    %cst_68 = arith.constant dense<0.000000e+00> : vector<32x128xf32>
    %193 = tpu.matmul %191, %192, %cst_68 {dimension_numbers = #tpu.dot_dimension_numbers<[0], [0], [1], [1], [0, 1, 1, 1], [], []>} : vector<32x32xf32>, vector<32x128xf32>, vector<32x128xf32> -> vector<32x128xf32>
    %c0_69 = arith.constant 0 : index
    %c0_70 = arith.constant 0 : index
    %194 = vector.load %arg5[%c0_69, %c0_70] : memref<1x128xf32, #tpu.memory_space<vmem>>, vector<1x128xf32>
    %195 = vector.broadcast %194 : vector<1x128xf32> to vector<32x128xf32>
    %196 = arith.addf %193, %195 : vector<32x128xf32>
    %c0_71 = arith.constant 0 : index
    %c0_72 = arith.constant 0 : index
    %197 = vector.load %arg6[%c0_71, %c0_72] : memref<32x128xf32, #tpu.memory_space<vmem>>, vector<32x128xf32>
    tpu.vector_store %arg6[%c0_71, %c0_72], %196 {strides = array<i32>} : memref<32x128xf32, #tpu.memory_space<vmem>>, vector<32x128xf32>,
    return
  }
}

</mosaic_0001>

<llo_original>
// kernel: tpu_custom_call.1
$region0: #{tpu_custom_call.1}
  #allocation0 [shape = 'u32[]', space=smem, size = 0x4, offset = 0x4, fixed_abs, tag = 'smem constant byte address 0x4 - core index']
  #allocation1 [shape = 'u32[144,128]{1,0:T(1,128)}', space=vmem, size = 0x12000, scoped, tag = 'internal scratch']
  #allocation2 [shape = 'f32[8,128,32]{2,1,0:T(8,128)}', space=vmem, size = 0x80000, scoped, tag = 'scratch operand']
  %s0 = inlined_call_operand.vmem [shape: f32[8,256], index: 0, kind: input, shape index: {}]
  %s1 = inlined_call_operand.vmem [shape: f32[128,8], index: 1, kind: input, shape index: {}]
  %s2 = inlined_call_operand.vmem [shape: f32[96,32], index: 2, kind: input, shape index: {}]
  %s3 = inlined_call_operand.vmem [shape: f32[128,256], index: 3, kind: input, shape index: {}]
  %s4 = inlined_call_operand.hbm [shape: f32[32,128], index: 4, kind: input, shape index: {}]
  %s5 = inlined_call_operand.vmem [shape: f32[1,128], index: 5, kind: input, shape index: {}]
  %s6 = inlined_call_operand.hbm [shape: f32[32,128], index: 6, kind: output, shape index: {}]
  %s7 = sld [smem:[#allocation0]]
  $region38: #{tpu_custom_call.1} parent=0
    _
  %s9 = ssub.s32 1, %s7
  %s10 = scalar_select 0, %s9, %s7
  $region1: #{tpu_custom_call.1} parent=0
    #allocation3 [shape = 'u8[16384]{0}', space=vmem, size = 0x4000, scoped, tag = 'input window, operand 4, single buffered']
    #allocation4 [shape = 's32[1]{0}', space=sflag, size = 0x4, scoped, tag = 'scoped memory for tpu_custom_call.1']
    #allocation5 [shape = 's32[1]{0}', space=sflag, size = 0x4, scoped, tag = 'scoped memory for tpu_custom_call.1']
    #allocation6 [shape = 'u8[16384]{0}', space=vmem, size = 0x4000, scoped, tag = 'output window, operand 0, single buffered']
    %11 = vsyncpa [#allocation4], 0
    %12 = vsyncpa [#allocation5], 0
    // Predicated region
    $region2: #{tpu_custom_call.1} parent=1 // pred_check
      _
    $region3: #{tpu_custom_call.1} parent=1 // pred_check_branch
      %14 = sbr.rel (0) target = $region5
    $region4: #{tpu_custom_call.1} parent=1 // pred_region
      _
    $region5: #{tpu_custom_call.1} parent=1 // pred_fallthru
      _
    // Predicated region
    $region6: #{tpu_custom_call.1} parent=1 // pred_check
      _
    $region7: #{tpu_custom_call.1} parent=1 // pred_check_branch
      %16 = sbr.rel (0) target = $region9
    $region8: #{tpu_custom_call.1} parent=1 // pred_region
      _
    $region9: #{tpu_custom_call.1} parent=1 // pred_fallthru
      _
    // Predicated region
    $region10: #{tpu_custom_call.1} parent=1 // pred_check
      _
    $region11: #{tpu_custom_call.1} parent=1 // pred_check_branch
      %18 = sbr.rel (0) target = $region13
    $region12: #{tpu_custom_call.1} parent=1 // pred_region
      _
    $region13: #{tpu_custom_call.1} parent=1 // pred_fallthru
      _
    // Predicated region
    $region14: #{tpu_custom_call.1} parent=1 // pred_check
      _
    $region15: #{tpu_custom_call.1} parent=1 // pred_check_branch
      %20 = sbr.rel (0) target = $region17
    $region16: #{tpu_custom_call.1} parent=1 // pred_region
      _
    $region17: #{tpu_custom_call.1} parent=1 // pred_fallthru
      _
    // Predicated region
    $region18: #{tpu_custom_call.1} parent=1 // pred_check
      _
    $region19: #{tpu_custom_call.1} parent=1 // pred_check_branch
      %22 = sbr.rel (0) target = $region21
    $region20: #{tpu_custom_call.1} parent=1 // pred_region
      %s24 = ssub.s32 512, 512
      %25 = vsyncadd [#allocation4], %s24
      %s26 = sshll.u32 [#allocation3], 4
      %s27 = int_to_ptr.vmem [resolvable:$true] %s26
      %32 = dma.hbm_to_vmem [thread:$0]  %s4, 512, %s27, [#allocation4], 128, 128, 8
    $region21: #{tpu_custom_call.1} parent=1 // pred_fallthru
      _
    // Predicated region
    $region22: #{tpu_custom_call.1} parent=1 // pred_check
      _
    $region23: #{tpu_custom_call.1} parent=1 // pred_check_branch
      %34 = sbr.rel (0) target = $region25
    $region24: #{tpu_custom_call.1} parent=1 // pred_region
      _
    $region25: #{tpu_custom_call.1} parent=1 // pred_fallthru
      _
    // Predicated region
    $region26: #{tpu_custom_call.1} parent=1 // pred_check
      _
    $region27: #{tpu_custom_call.1} parent=1 // pred_check_branch
      %36 = sbr.rel (0) target = $region29
    $region28: #{tpu_custom_call.1} parent=1 // pred_region
      %37 = dma.done [#allocation4], 512
    $region29: #{tpu_custom_call.1} parent=1 // pred_fallthru
      _
    %v38 = vld [vmem:[%s1] sm:$0xff]
    %v39 = vld [vmem:[%s1 + $0x8] sm:$0xff]
    %v40 = vld [vmem:[%s1 + $0x10] sm:$0xff]
    %v41 = vld [vmem:[%s1 + $0x18] sm:$0xff]
    %v42 = vld [vmem:[%s1 + $0x20] sm:$0xff]
    %v43 = vld [vmem:[%s1 + $0x28] sm:$0xff]
    %v44 = vld [vmem:[%s1 + $0x30] sm:$0xff]
    %v45 = vld [vmem:[%s1 + $0x38] sm:$0xff]
    %v46 = vld [vmem:[%s1 + $0x40] sm:$0xff]
    %v47 = vld [vmem:[%s1 + $0x48] sm:$0xff]
    %v48 = vld [vmem:[%s1 + $0x50] sm:$0xff]
    %v49 = vld [vmem:[%s1 + $0x58] sm:$0xff]
    %v50 = vld [vmem:[%s1 + $0x60] sm:$0xff]
    %v51 = vld [vmem:[%s1 + $0x68] sm:$0xff]
    %v52 = vld [vmem:[%s1 + $0x70] sm:$0xff]
    %v53 = vld [vmem:[%s1 + $0x78] sm:$0xff]
    %v54 = vld [vmem:[%s0] sm:$0xff]
    %v55 = vld [vmem:[%s0 + $0x8] sm:$0xff]
    %v56 = vld [vmem:[%s3] sm:$0xff]
    %v57 = vld [vmem:[%s3 + $0x8] sm:$0xff]
    %v58 = vld [vmem:[%s3 + $0x10] sm:$0xff]
    %v59 = vld [vmem:[%s3 + $0x18] sm:$0xff]
    %v60 = vld [vmem:[%s3 + $0x20] sm:$0xff]
    %v61 = vld [vmem:[%s3 + $0x28] sm:$0xff]
    %v62 = vld [vmem:[%s3 + $0x30] sm:$0xff]
    %v63 = vld [vmem:[%s3 + $0x38] sm:$0xff]
    %v64 = vld [vmem:[%s3 + $0x40] sm:$0xff]
    %v65 = vld [vmem:[%s3 + $0x48] sm:$0xff]
    %v66 = vld [vmem:[%s3 + $0x50] sm:$0xff]
    %v67 = vld [vmem:[%s3 + $0x58] sm:$0xff]
    %v68 = vld [vmem:[%s3 + $0x60] sm:$0xff]
    %v69 = vld [vmem:[%s3 + $0x68] sm:$0xff]
    %v70 = vld [vmem:[%s3 + $0x70] sm:$0xff]
    %v71 = vld [vmem:[%s3 + $0x78] sm:$0xff]
    %v72 = vld [vmem:[%s3 + $0x80] sm:$0xff]
    %v73 = vld [vmem:[%s3 + $0x88] sm:$0xff]
    %v74 = vld [vmem:[%s3 + $0x90] sm:$0xff]
    %v75 = vld [vmem:[%s3 + $0x98] sm:$0xff]
    %v76 = vld [vmem:[%s3 + $0xa0] sm:$0xff]
    %v77 = vld [vmem:[%s3 + $0xa8] sm:$0xff]
    %v78 = vld [vmem:[%s3 + $0xb0] sm:$0xff]
    %v79 = vld [vmem:[%s3 + $0xb8] sm:$0xff]
    %v80 = vld [vmem:[%s3 + $0xc0] sm:$0xff]
    %v81 = vld [vmem:[%s3 + $0xc8] sm:$0xff]
    %v82 = vld [vmem:[%s3 + $0xd0] sm:$0xff]
    %v83 = vld [vmem:[%s3 + $0xd8] sm:$0xff]
    %v84 = vld [vmem:[%s3 + $0xe0] sm:$0xff]
    %v85 = vld [vmem:[%s3 + $0xe8] sm:$0xff]
    %v86 = vld [vmem:[%s3 + $0xf0] sm:$0xff]
    %v87 = vld [vmem:[%s3 + $0xf8] sm:$0xff]
    %vm88 = vcmask 64512
    %v90 = vsel %vm88, %v38, 0
    %v93 = vsel %vm88, %v39, 0
    %v96 = vsel %vm88, %v40, 0
    %v99 = vsel %vm88, %v41, 0
    %v102 = vsel %vm88, %v42, 0
    %v105 = vsel %vm88, %v43, 0
    %v108 = vsel %vm88, %v44, 0
    %v111 = vsel %vm88, %v45, 0
    %v114 = vsel %vm88, %v46, 0
    %v117 = vsel %vm88, %v47, 0
    %v120 = vsel %vm88, %v48, 0
    %v123 = vsel %vm88, %v49, 0
    %v126 = vsel %vm88, %v50, 0
    %v129 = vsel %vm88, %v51, 0
    %v132 = vsel %vm88, %v52, 0
    %v135 = vsel %vm88, %v53, 0
    %137 = vmatprep.subr.mxu0 %v55
    %138 = vmatpush1.msra.mxu0 %v54
    %139 = vmatprep.subr.mxu0 0.0
    %140 = vmatpush1.msra.mxu0 0.0
    %141 = vmatprep.subr.mxu0 0.0
    %142 = vmatpush1.msra.mxu0 0.0
    %143 = vmatprep.subr.mxu0 0.0
    %144 = vmatpush1.msra.mxu0 0.0
    %145 = vmatprep.subr.mxu0 0.0
    %146 = vmatpush1.msra.mxu0 0.0
    %147 = vmatprep.subr.mxu0 0.0
    %148 = vmatpush1.msra.mxu0 0.0
    %149 = vmatprep.subr.mxu0 0.0
    %150 = vmatpush1.msra.mxu0 0.0
    %151 = vmatprep.subr.mxu0 0.0
    %152 = vmatpush1.msra.mxu0 0.0
    %153 = vmatprep.subr.mxu0 0.0
    %154 = vmatpush1.msra.mxu0 0.0
    %155 = vmatprep.subr.mxu0 0.0
    %156 = vmatpush1.msra.mxu0 0.0
    %157 = vmatprep.subr.mxu0 0.0
    %158 = vmatpush1.msra.mxu0 0.0
    %159 = vmatprep.subr.mxu0 0.0
    %160 = vmatpush1.msra.mxu0 0.0
    %161 = vmatprep.subr.mxu0 0.0
    %162 = vmatpush1.msra.mxu0 0.0
    %163 = vmatprep.subr.mxu0 0.0
    %164 = vmatpush1.msra.mxu0 0.0
    %165 = vmatprep.subr.mxu0 0.0
    %166 = vmatpush1.msra.mxu0 0.0
    %167 = vmatprep.subr.mxu0 0.0
    %168 = vmatpush1.msra.mxu0 0.0
    %169 = vmatprep.subr.mxu0 0.0
    %170 = vmatpush1.msra.mxu0 0.0
    %171 = vmatprep.subr.mxu0 0.0
    %172 = vmatpush1.msra.mxu0 0.0
    %173 = vmatprep.subr.mxu0 0.0
    %174 = vmatpush1.msra.mxu0 0.0
    %175 = vmatprep.subr.mxu0 0.0
    %176 = vmatpush1.msra.mxu0 0.0
    %177 = vmatprep.subr.mxu0 0.0
    %178 = vmatpush1.msra.mxu0 0.0
    %179 = vmatprep.subr.mxu0 0.0
    %180 = vmatpush1.msra.mxu0 0.0
    %181 = vmatprep.subr.mxu0 0.0
    %182 = vmatpush1.msra.mxu0 0.0
    %183 = vmatprep.subr.mxu0 0.0
    %184 = vmatpush1.msra.mxu0 0.0
    %185 = vmatprep.subr.mxu0 0.0
    %186 = vmatpush1.msra.mxu0 0.0
    %187 = vmatprep.subr.mxu0 0.0
    %188 = vmatpush1.msra.mxu0 0.0
    %189 = vmatprep.subr.mxu0 0.0
    %190 = vmatpush1.msra.mxu0 0.0
    %191 = vmatprep.subr.mxu0 0.0
    %192 = vmatpush1.msra.mxu0 0.0
    %193 = vmatprep.subr.mxu0 0.0
    %194 = vmatpush1.msra.mxu0 0.0
    %195 = vmatprep.subr.mxu0 0.0
    %196 = vmatpush1.msra.mxu0 0.0
    %197 = vmatprep.subr.mxu0 0.0
    %198 = vmatpush1.msra.mxu0 0.0
    %199 = vmatprep.subr.mxu0 0.0
    %200 = vmatpush1.msra.mxu0 0.0
    %201 = vmatprep.mubr.f32.mxu0 0.0
    %202 = vmatmul.mubr.f32.gmra.mrb[0].mxu0 %v90
    %v203 = vpop.f32.mrb[0].mxu0
    %v204 = vadd.f32 %v56, %v203
    %v205 = vpop.f32.mrb[0].mxu0
    %v206 = vadd.f32 %v57, %v205
    %207 = vmatprep.mubr.f32.mxu0 0.0
    %208 = vmatmul.mubr.f32.gmra.mrb[0].mxu0 %v93
    %v209 = vpop.f32.mrb[0].mxu0
    %v210 = vadd.f32 %v58, %v209
    %v211 = vpop.f32.mrb[0].mxu0
    %v212 = vadd.f32 %v59, %v211
    %213 = vmatprep.mubr.f32.mxu0 0.0
    %214 = vmatmul.mubr.f32.gmra.mrb[0].mxu0 %v96
    %v215 = vpop.f32.mrb[0].mxu0
    %v216 = vadd.f32 %v60, %v215
    %v217 = vpop.f32.mrb[0].mxu0
    %v218 = vadd.f32 %v61, %v217
    %219 = vmatprep.mubr.f32.mxu0 0.0
    %220 = vmatmul.mubr.f32.gmra.mrb[0].mxu0 %v99
    %v221 = vpop.f32.mrb[0].mxu0
    %v222 = vadd.f32 %v62, %v221
    %v223 = vpop.f32.mrb[0].mxu0
    %v224 = vadd.f32 %v63, %v223
    %225 = vmatprep.mubr.f32.mxu0 0.0
    %226 = vmatmul.mubr.f32.gmra.mrb[0].mxu0 %v102
    %v227 = vpop.f32.mrb[0].mxu0
    %v228 = vadd.f32 %v64, %v227
    %v229 = vpop.f32.mrb[0].mxu0
    %v230 = vadd.f32 %v65, %v229
    %231 = vmatprep.mubr.f32.mxu0 0.0
    %232 = vmatmul.mubr.f32.gmra.mrb[0].mxu0 %v105
    %v233 = vpop.f32.mrb[0].mxu0
    %v234 = vadd.f32 %v66, %v233
    %v235 = vpop.f32.mrb[0].mxu0
    %v236 = vadd.f32 %v67, %v235
    %237 = vmatprep.mubr.f32.mxu0 0.0
    %238 = vmatmul.mubr.f32.gmra.mrb[0].mxu0 %v108
    %v239 = vpop.f32.mrb[0].mxu0
    %v240 = vadd.f32 %v68, %v239
    %v241 = vpop.f32.mrb[0].mxu0
    %v242 = vadd.f32 %v69, %v241
    %243 = vmatprep.mubr.f32.mxu0 0.0
    %244 = vmatmul.mubr.f32.gmra.mrb[0].mxu0 %v111
    %v245 = vpop.f32.mrb[0].mxu0
    %v246 = vadd.f32 %v70, %v245
    %v247 = vpop.f32.mrb[0].mxu0
    %v248 = vadd.f32 %v71, %v247
    %249 = vmatprep.mubr.f32.mxu0 0.0
    %250 = vmatmul.mubr.f32.gmra.mrb[0].mxu0 %v114
    %v251 = vpop.f32.mrb[0].mxu0
    %v252 = vadd.f32 %v72, %v251
    %v253 = vpop.f32.mrb[0].mxu0
    %v254 = vadd.f32 %v73, %v253
    %255 = vmatprep.mubr.f32.mxu0 0.0
    %256 = vmatmul.mubr.f32.gmra.mrb[0].mxu0 %v117
    %v257 = vpop.f32.mrb[0].mxu0
    %v258 = vadd.f32 %v74, %v257
    %v259 = vpop.f32.mrb[0].mxu0
    %v260 = vadd.f32 %v75, %v259
    %261 = vmatprep.mubr.f32.mxu0 0.0
    %262 = vmatmul.mubr.f32.gmra.mrb[0].mxu0 %v120
    %v263 = vpop.f32.mrb[0].mxu0
    %v264 = vadd.f32 %v76, %v263
    %v265 = vpop.f32.mrb[0].mxu0
    %v266 = vadd.f32 %v77, %v265
    %267 = vmatprep.mubr.f32.mxu0 0.0
    %268 = vmatmul.mubr.f32.gmra.mrb[0].mxu0 %v123
    %v269 = vpop.f32.mrb[0].mxu0
    %v270 = vadd.f32 %v78, %v269
    %v271 = vpop.f32.mrb[0].mxu0
    %v272 = vadd.f32 %v79, %v271
    %273 = vmatprep.mubr.f32.mxu0 0.0
    %274 = vmatmul.mubr.f32.gmra.mrb[0].mxu0 %v126
    %v275 = vpop.f32.mrb[0].mxu0
    %v276 = vadd.f32 %v80, %v275
    %v277 = vpop.f32.mrb[0].mxu0
    %v278 = vadd.f32 %v81, %v277
    %279 = vmatprep.mubr.f32.mxu0 0.0
    %280 = vmatmul.mubr.f32.gmra.mrb[0].mxu0 %v129
    %v281 = vpop.f32.mrb[0].mxu0
    %v282 = vadd.f32 %v82, %v281
    %v283 = vpop.f32.mrb[0].mxu0
    %v284 = vadd.f32 %v83, %v283
    %285 = vmatprep.mubr.f32.mxu0 0.0
    %286 = vmatmul.mubr.f32.gmra.mrb[0].mxu0 %v132
    %v287 = vpop.f32.mrb[0].mxu0
    %v288 = vadd.f32 %v84, %v287
    %v289 = vpop.f32.mrb[0].mxu0
    %v290 = vadd.f32 %v85, %v289
    %291 = vmatprep.mubr.f32.mxu0 0.0
    %292 = vmatmul.mubr.f32.gmra.mrb[0].mxu0 %v135
    %v293 = vpop.f32.mrb[0].mxu0
    %v294 = vadd.f32 %v86, %v293
    %v295 = vpop.f32.mrb[0].mxu0
    %v296 = vadd.f32 %v87, %v295
    %297 = vdwg.mxu0
    %v298 = vxor.u32 %v276, 2147483648
    %v299 = vxor.u32 %v278, 2147483648
    %v300 = vxor.u32 %v282, 2147483648
    %v301 = vxor.u32 %v284, 2147483648
    %v302 = vxor.u32 %v288, 2147483648
    %v303 = vxor.u32 %v290, 2147483648
    %v304 = vxor.u32 %v294, 2147483648
    %v305 = vxor.u32 %v296, 2147483648
    %v306 = vmul.f32 %v298, 1.442695
    %v307 = vpow.pop %v306
    %v308 = vmul.f32 %v299, 1.442695
    %v309 = vpow.pop %v308
    %v310 = vmul.f32 %v300, 1.442695
    %v311 = vpow.pop %v310
    %v312 = vmul.f32 %v301, 1.442695
    %v313 = vpow.pop %v312
    %v314 = vmul.f32 %v302, 1.442695
    %v315 = vpow.pop %v314
    %v316 = vmul.f32 %v303, 1.442695
    %v317 = vpow.pop %v316
    %v318 = vmul.f32 %v304, 1.442695
    %v319 = vpow.pop %v318
    %v320 = vmul.f32 %v305, 1.442695
    %v321 = vpow.pop %v320
    %v322 = vadd.f32 %v307, 1.0
    %v323 = vadd.f32 %v309, 1.0
    %v324 = vadd.f32 %v311, 1.0
    %v325 = vadd.f32 %v313, 1.0
    %v326 = vadd.f32 %v315, 1.0
    %v327 = vadd.f32 %v317, 1.0
    %v328 = vadd.f32 %v319, 1.0
    %v329 = vadd.f32 %v321, 1.0
    %v330 = vrcp.pop %v322
    %v331 = vmul.f32 1.0, %v330
    %v332 = vrcp.pop %v323
    %v333 = vmul.f32 1.0, %v332
    %v334 = vrcp.pop %v324
    %v335 = vmul.f32 1.0, %v334
    %v336 = vrcp.pop %v325
    %v337 = vmul.f32 1.0, %v336
    %v338 = vrcp.pop %v326
    %v339 = vmul.f32 1.0, %v338
    %v340 = vrcp.pop %v327
    %v341 = vmul.f32 1.0, %v340
    %v342 = vrcp.pop %v328
    %v343 = vmul.f32 1.0, %v342
    %v344 = vrcp.pop %v329
    %v345 = vmul.f32 1.0, %v344
    %vm346 = vcmask 261120
    %347 = vst.msk [vmem:[#allocation2] sm:$0xff] %vm346, %v204
    %348 = vst.msk [vmem:[#allocation2 + $0x8] sm:$0xff] %vm346, %v210
    %349 = vst.msk [vmem:[#allocation2 + $0x10] sm:$0xff] %vm346, %v216
    %350 = vst.msk [vmem:[#allocation2 + $0x18] sm:$0xff] %vm346, %v222
    %351 = vst.msk [vmem:[#allocation2 + $0x20] sm:$0xff] %vm346, %v228
    %352 = vst.msk [vmem:[#allocation2 + $0x28] sm:$0xff] %vm346, %v234
    %353 = vst.msk [vmem:[#allocation2 + $0x30] sm:$0xff] %vm346, %v240
    %354 = vst.msk [vmem:[#allocation2 + $0x38] sm:$0xff] %vm346, %v246
    %355 = vst.msk [vmem:[#allocation2 + $0x40] sm:$0xff] %vm346, %v252
    %356 = vst.msk [vmem:[#allocation2 + $0x48] sm:$0xff] %vm346, %v258
    %357 = vst.msk [vmem:[#allocation2 + $0x50] sm:$0xff] %vm346, %v264
    %358 = vst.msk [vmem:[#allocation2 + $0x58] sm:$0xff] %vm346, %v270
    %359 = vst.msk [vmem:[#allocation2 + $0x60] sm:$0xff] %vm346, %v331
    %360 = vst.msk [vmem:[#allocation2 + $0x68] sm:$0xff] %vm346, %v335
    %361 = vst.msk [vmem:[#allocation2 + $0x70] sm:$0xff] %vm346, %v339
    %362 = vst.msk [vmem:[#allocation2 + $0x78] sm:$0xff] %vm346, %v343
    %379 = vrot.lane.b32.xlu0 %v204, 96
    %v380 = vpop.permute.xlu0 %379
    %381 = vrot.lane.b32.xlu0 %v210, 96
    %v382 = vpop.permute.xlu0 %381
    %383 = vrot.lane.b32.xlu0 %v216, 96
    %v384 = vpop.permute.xlu0 %383
    %385 = vrot.lane.b32.xlu0 %v222, 96
    %v386 = vpop.permute.xlu0 %385
    %387 = vrot.lane.b32.xlu0 %v228, 96
    %v388 = vpop.permute.xlu0 %387
    %389 = vrot.lane.b32.xlu0 %v234, 96
    %v390 = vpop.permute.xlu0 %389
    %391 = vrot.lane.b32.xlu0 %v240, 96
    %v392 = vpop.permute.xlu0 %391
    %393 = vrot.lane.b32.xlu0 %v246, 96
    %v394 = vpop.permute.xlu0 %393
    %395 = vrot.lane.b32.xlu0 %v252, 96
    %v396 = vpop.permute.xlu0 %395
    %397 = vrot.lane.b32.xlu0 %v258, 96
    %v398 = vpop.permute.xlu0 %397
    %399 = vrot.lane.b32.xlu0 %v264, 96
    %v400 = vpop.permute.xlu0 %399
    %401 = vrot.lane.b32.xlu0 %v270, 96
    %v402 = vpop.permute.xlu0 %401
    %403 = vrot.lane.b32.xlu0 %v331, 96
    %v404 = vpop.permute.xlu0 %403
    %405 = vrot.lane.b32.xlu0 %v335, 96
    %v406 = vpop.permute.xlu0 %405
    %407 = vrot.lane.b32.xlu0 %v339, 96
    %v408 = vpop.permute.xlu0 %407
    %409 = vrot.lane.b32.xlu0 %v343, 96
    %v410 = vpop.permute.xlu0 %409
    %s427 = scalar_lea.vmem [#allocation2], 128
    %428 = vst.msk [vmem:[%s427] sm:$0xff] %vm346, %v380
    %429 = vst.msk [vmem:[%s427 + $0x8] sm:$0xff] %vm346, %v382
    %430 = vst.msk [vmem:[%s427 + $0x10] sm:$0xff] %vm346, %v384
    %431 = vst.msk [vmem:[%s427 + $0x18] sm:$0xff] %vm346, %v386
    %432 = vst.msk [vmem:[%s427 + $0x20] sm:$0xff] %vm346, %v388
    %433 = vst.msk [vmem:[%s427 + $0x28] sm:$0xff] %vm346, %v390
    %434 = vst.msk [vmem:[%s427 + $0x30] sm:$0xff] %vm346, %v392
    %435 = vst.msk [vmem:[%s427 + $0x38] sm:$0xff] %vm346, %v394
    %436 = vst.msk [vmem:[%s427 + $0x40] sm:$0xff] %vm346, %v396
    %437 = vst.msk [vmem:[%s427 + $0x48] sm:$0xff] %vm346, %v398
    %438 = vst.msk [vmem:[%s427 + $0x50] sm:$0xff] %vm346, %v400
    %439 = vst.msk [vmem:[%s427 + $0x58] sm:$0xff] %vm346, %v402
    %440 = vst.msk [vmem:[%s427 + $0x60] sm:$0xff] %vm346, %v404
    %441 = vst.msk [vmem:[%s427 + $0x68] sm:$0xff] %vm346, %v406
    %442 = vst.msk [vmem:[%s427 + $0x70] sm:$0xff] %vm346, %v408
    %443 = vst.msk [vmem:[%s427 + $0x78] sm:$0xff] %vm346, %v410
    %444 = vrot.lane.b32.xlu0 %v204, 64
    %v445 = vpop.permute.xlu0 %444
    %446 = vrot.lane.b32.xlu0 %v210, 64
    %v447 = vpop.permute.xlu0 %446
    %448 = vrot.lane.b32.xlu0 %v216, 64
    %v449 = vpop.permute.xlu0 %448
    %450 = vrot.lane.b32.xlu0 %v222, 64
    %v451 = vpop.permute.xlu0 %450
    %452 = vrot.lane.b32.xlu0 %v228, 64
    %v453 = vpop.permute.xlu0 %452
    %454 = vrot.lane.b32.xlu0 %v234, 64
    %v455 = vpop.permute.xlu0 %454
    %456 = vrot.lane.b32.xlu0 %v240, 64
    %v457 = vpop.permute.xlu0 %456
    %458 = vrot.lane.b32.xlu0 %v246, 64
    %v459 = vpop.permute.xlu0 %458
    %460 = vrot.lane.b32.xlu0 %v252, 64
    %v461 = vpop.permute.xlu0 %460
    %462 = vrot.lane.b32.xlu0 %v258, 64
    %v463 = vpop.permute.xlu0 %462
    %464 = vrot.lane.b32.xlu0 %v264, 64
    %v465 = vpop.permute.xlu0 %464
    %466 = vrot.lane.b32.xlu0 %v270, 64
    %v467 = vpop.permute.xlu0 %466
    %468 = vrot.lane.b32.xlu0 %v331, 64
    %v469 = vpop.permute.xlu0 %468
    %470 = vrot.lane.b32.xlu0 %v335, 64
    %v471 = vpop.permute.xlu0 %470
    %472 = vrot.lane.b32.xlu0 %v339, 64
    %v473 = vpop.permute.xlu0 %472
    %474 = vrot.lane.b32.xlu0 %v343, 64
    %v475 = vpop.permute.xlu0 %474
    %s492 = scalar_lea.vmem [#allocation2], 256
    %493 = vst.msk [vmem:[%s492] sm:$0xff] %vm346, %v445
    %494 = vst.msk [vmem:[%s492 + $0x8] sm:$0xff] %vm346, %v447
    %495 = vst.msk [vmem:[%s492 + $0x10] sm:$0xff] %vm346, %v449
    %496 = vst.msk [vmem:[%s492 + $0x18] sm:$0xff] %vm346, %v451
    %497 = vst.msk [vmem:[%s492 + $0x20] sm:$0xff] %vm346, %v453
    %498 = vst.msk [vmem:[%s492 + $0x28] sm:$0xff] %vm346, %v455
    %499 = vst.msk [vmem:[%s492 + $0x30] sm:$0xff] %vm346, %v457
    %500 = vst.msk [vmem:[%s492 + $0x38] sm:$0xff] %vm346, %v459
    %501 = vst.msk [vmem:[%s492 + $0x40] sm:$0xff] %vm346, %v461
    %502 = vst.msk [vmem:[%s492 + $0x48] sm:$0xff] %vm346, %v463
    %503 = vst.msk [vmem:[%s492 + $0x50] sm:$0xff] %vm346, %v465
    %504 = vst.msk [vmem:[%s492 + $0x58] sm:$0xff] %vm346, %v467
    %505 = vst.msk [vmem:[%s492 + $0x60] sm:$0xff] %vm346, %v469
    %506 = vst.msk [vmem:[%s492 + $0x68] sm:$0xff] %vm346, %v471
    %507 = vst.msk [vmem:[%s492 + $0x70] sm:$0xff] %vm346, %v473
    %508 = vst.msk [vmem:[%s492 + $0x78] sm:$0xff] %vm346, %v475
    %509 = vrot.lane.b32.xlu0 %v204, 32
    %v510 = vpop.permute.xlu0 %509
    %511 = vrot.lane.b32.xlu0 %v210, 32
    %v512 = vpop.permute.xlu0 %511
    %513 = vrot.lane.b32.xlu0 %v216, 32
    %v514 = vpop.permute.xlu0 %513
    %515 = vrot.lane.b32.xlu0 %v222, 32
    %v516 = vpop.permute.xlu0 %515
    %517 = vrot.lane.b32.xlu0 %v228, 32
    %v518 = vpop.permute.xlu0 %517
    %519 = vrot.lane.b32.xlu0 %v234, 32
    %v520 = vpop.permute.xlu0 %519
    %521 = vrot.lane.b32.xlu0 %v240, 32
    %v522 = vpop.permute.xlu0 %521
    %523 = vrot.lane.b32.xlu0 %v246, 32
    %v524 = vpop.permute.xlu0 %523
    %525 = vrot.lane.b32.xlu0 %v252, 32
    %v526 = vpop.permute.xlu0 %525
    %527 = vrot.lane.b32.xlu0 %v258, 32
    %v528 = vpop.permute.xlu0 %527
    %529 = vrot.lane.b32.xlu0 %v264, 32
    %v530 = vpop.permute.xlu0 %529
    %531 = vrot.lane.b32.xlu0 %v270, 32
    %v532 = vpop.permute.xlu0 %531
    %533 = vrot.lane.b32.xlu0 %v331, 32
    %v534 = vpop.permute.xlu0 %533
    %535 = vrot.lane.b32.xlu0 %v335, 32
    %v536 = vpop.permute.xlu0 %535
    %537 = vrot.lane.b32.xlu0 %v339, 32
    %v538 = vpop.permute.xlu0 %537
    %539 = vrot.lane.b32.xlu0 %v343, 32
    %v540 = vpop.permute.xlu0 %539
    %s557 = scalar_lea.vmem [#allocation2], 384
    %558 = vst.msk [vmem:[%s557] sm:$0xff] %vm346, %v510
    %559 = vst.msk [vmem:[%s557 + $0x8] sm:$0xff] %vm346, %v512
    %560 = vst.msk [vmem:[%s557 + $0x10] sm:$0xff] %vm346, %v514
    %561 = vst.msk [vmem:[%s557 + $0x18] sm:$0xff] %vm346, %v516
    %562 = vst.msk [vmem:[%s557 + $0x20] sm:$0xff] %vm346, %v518
    %563 = vst.msk [vmem:[%s557 + $0x28] sm:$0xff] %vm346, %v520
    %564 = vst.msk [vmem:[%s557 + $0x30] sm:$0xff] %vm346, %v522
    %565 = vst.msk [vmem:[%s557 + $0x38] sm:$0xff] %vm346, %v524
    %566 = vst.msk [vmem:[%s557 + $0x40] sm:$0xff] %vm346, %v526
    %567 = vst.msk [vmem:[%s557 + $0x48] sm:$0xff] %vm346, %v528
    %568 = vst.msk [vmem:[%s557 + $0x50] sm:$0xff] %vm346, %v530
    %569 = vst.msk [vmem:[%s557 + $0x58] sm:$0xff] %vm346, %v532
    %570 = vst.msk [vmem:[%s557 + $0x60] sm:$0xff] %vm346, %v534
    %571 = vst.msk [vmem:[%s557 + $0x68] sm:$0xff] %vm346, %v536
    %572 = vst.msk [vmem:[%s557 + $0x70] sm:$0xff] %vm346, %v538
    %573 = vst.msk [vmem:[%s557 + $0x78] sm:$0xff] %vm346, %v540
    %s574 = scalar_lea.vmem [#allocation2], 512
    %575 = vst.msk [vmem:[%s574] sm:$0xff] %vm346, %v206
    %576 = vst.msk [vmem:[%s574 + $0x8] sm:$0xff] %vm346, %v212
    %577 = vst.msk [vmem:[%s574 + $0x10] sm:$0xff] %vm346, %v218
    %578 = vst.msk [vmem:[%s574 + $0x18] sm:$0xff] %vm346, %v224
    %579 = vst.msk [vmem:[%s574 + $0x20] sm:$0xff] %vm346, %v230
    %580 = vst.msk [vmem:[%s574 + $0x28] sm:$0xff] %vm346, %v236
    %581 = vst.msk [vmem:[%s574 + $0x30] sm:$0xff] %vm346, %v242
    %582 = vst.msk [vmem:[%s574 + $0x38] sm:$0xff] %vm346, %v248
    %583 = vst.msk [vmem:[%s574 + $0x40] sm:$0xff] %vm346, %v254
    %584 = vst.msk [vmem:[%s574 + $0x48] sm:$0xff] %vm346, %v260
    %585 = vst.msk [vmem:[%s574 + $0x50] sm:$0xff] %vm346, %v266
    %586 = vst.msk [vmem:[%s574 + $0x58] sm:$0xff] %vm346, %v272
    %587 = vst.msk [vmem:[%s574 + $0x60] sm:$0xff] %vm346, %v333
    %588 = vst.msk [vmem:[%s574 + $0x68] sm:$0xff] %vm346, %v337
    %589 = vst.msk [vmem:[%s574 + $0x70] sm:$0xff] %vm346, %v341
    %590 = vst.msk [vmem:[%s574 + $0x78] sm:$0xff] %vm346, %v345
    %607 = vrot.lane.b32.xlu0 %v206, 96
    %v608 = vpop.permute.xlu0 %607
    %609 = vrot.lane.b32.xlu0 %v212, 96
    %v610 = vpop.permute.xlu0 %609
    %611 = vrot.lane.b32.xlu0 %v218, 96
    %v612 = vpop.permute.xlu0 %611
    %613 = vrot.lane.b32.xlu0 %v224, 96
    %v614 = vpop.permute.xlu0 %613
    %615 = vrot.lane.b32.xlu0 %v230, 96
    %v616 = vpop.permute.xlu0 %615
    %617 = vrot.lane.b32.xlu0 %v236, 96
    %v618 = vpop.permute.xlu0 %617
    %619 = vrot.lane.b32.xlu0 %v242, 96
    %v620 = vpop.permute.xlu0 %619
    %621 = vrot.lane.b32.xlu0 %v248, 96
    %v622 = vpop.permute.xlu0 %621
    %623 = vrot.lane.b32.xlu0 %v254, 96
    %v624 = vpop.permute.xlu0 %623
    %625 = vrot.lane.b32.xlu0 %v260, 96
    %v626 = vpop.permute.xlu0 %625
    %627 = vrot.lane.b32.xlu0 %v266, 96
    %v628 = vpop.permute.xlu0 %627
    %629 = vrot.lane.b32.xlu0 %v272, 96
    %v630 = vpop.permute.xlu0 %629
    %631 = vrot.lane.b32.xlu0 %v333, 96
    %v632 = vpop.permute.xlu0 %631
    %633 = vrot.lane.b32.xlu0 %v337, 96
    %v634 = vpop.permute.xlu0 %633
    %635 = vrot.lane.b32.xlu0 %v341, 96
    %v636 = vpop.permute.xlu0 %635
    %637 = vrot.lane.b32.xlu0 %v345, 96
    %v638 = vpop.permute.xlu0 %637
    %s655 = scalar_lea.vmem [#allocation2], 640
    %656 = vst.msk [vmem:[%s655] sm:$0xff] %vm346, %v608
    %657 = vst.msk [vmem:[%s655 + $0x8] sm:$0xff] %vm346, %v610
    %658 = vst.msk [vmem:[%s655 + $0x10] sm:$0xff] %vm346, %v612
    %659 = vst.msk [vmem:[%s655 + $0x18] sm:$0xff] %vm346, %v614
    %660 = vst.msk [vmem:[%s655 + $0x20] sm:$0xff] %vm346, %v616
    %661 = vst.msk [vmem:[%s655 + $0x28] sm:$0xff] %vm346, %v618
    %662 = vst.msk [vmem:[%s655 + $0x30] sm:$0xff] %vm346, %v620
    %663 = vst.msk [vmem:[%s655 + $0x38] sm:$0xff] %vm346, %v622
    %664 = vst.msk [vmem:[%s655 + $0x40] sm:$0xff] %vm346, %v624
    %665 = vst.msk [vmem:[%s655 + $0x48] sm:$0xff] %vm346, %v626
    %666 = vst.msk [vmem:[%s655 + $0x50] sm:$0xff] %vm346, %v628
    %667 = vst.msk [vmem:[%s655 + $0x58] sm:$0xff] %vm346, %v630
    %668 = vst.msk [vmem:[%s655 + $0x60] sm:$0xff] %vm346, %v632
    %669 = vst.msk [vmem:[%s655 + $0x68] sm:$0xff] %vm346, %v634
    %670 = vst.msk [vmem:[%s655 + $0x70] sm:$0xff] %vm346, %v636
    %671 = vst.msk [vmem:[%s655 + $0x78] sm:$0xff] %vm346, %v638
    %672 = vrot.lane.b32.xlu0 %v206, 64
    %v673 = vpop.permute.xlu0 %672
    %674 = vrot.lane.b32.xlu0 %v212, 64
    %v675 = vpop.permute.xlu0 %674
    %676 = vrot.lane.b32.xlu0 %v218, 64
    %v677 = vpop.permute.xlu0 %676
    %678 = vrot.lane.b32.xlu0 %v224, 64
    %v679 = vpop.permute.xlu0 %678
    %680 = vrot.lane.b32.xlu0 %v230, 64
    %v681 = vpop.permute.xlu0 %680
    %682 = vrot.lane.b32.xlu0 %v236, 64
    %v683 = vpop.permute.xlu0 %682
    %684 = vrot.lane.b32.xlu0 %v242, 64
    %v685 = vpop.permute.xlu0 %684
    %686 = vrot.lane.b32.xlu0 %v248, 64
    %v687 = vpop.permute.xlu0 %686
    %688 = vrot.lane.b32.xlu0 %v254, 64
    %v689 = vpop.permute.xlu0 %688
    %690 = vrot.lane.b32.xlu0 %v260, 64
    %v691 = vpop.permute.xlu0 %690
    %692 = vrot.lane.b32.xlu0 %v266, 64
    %v693 = vpop.permute.xlu0 %692
    %694 = vrot.lane.b32.xlu0 %v272, 64
    %v695 = vpop.permute.xlu0 %694
    %696 = vrot.lane.b32.xlu0 %v333, 64
    %v697 = vpop.permute.xlu0 %696
    %698 = vrot.lane.b32.xlu0 %v337, 64
    %v699 = vpop.permute.xlu0 %698
    %700 = vrot.lane.b32.xlu0 %v341, 64
    %v701 = vpop.permute.xlu0 %700
    %702 = vrot.lane.b32.xlu0 %v345, 64
    %v703 = vpop.permute.xlu0 %702
    %s720 = scalar_lea.vmem [#allocation2], 768
    %721 = vst.msk [vmem:[%s720] sm:$0xff] %vm346, %v673
    %722 = vst.msk [vmem:[%s720 + $0x8] sm:$0xff] %vm346, %v675
    %723 = vst.msk [vmem:[%s720 + $0x10] sm:$0xff] %vm346, %v677
    %724 = vst.msk [vmem:[%s720 + $0x18] sm:$0xff] %vm346, %v679
    %725 = vst.msk [vmem:[%s720 + $0x20] sm:$0xff] %vm346, %v681
    %726 = vst.msk [vmem:[%s720 + $0x28] sm:$0xff] %vm346, %v683
    %727 = vst.msk [vmem:[%s720 + $0x30] sm:$0xff] %vm346, %v685
    %728 = vst.msk [vmem:[%s720 + $0x38] sm:$0xff] %vm346, %v687
    %729 = vst.msk [vmem:[%s720 + $0x40] sm:$0xff] %vm346, %v689
    %730 = vst.msk [vmem:[%s720 + $0x48] sm:$0xff] %vm346, %v691
    %731 = vst.msk [vmem:[%s720 + $0x50] sm:$0xff] %vm346, %v693
    %732 = vst.msk [vmem:[%s720 + $0x58] sm:$0xff] %vm346, %v695
    %733 = vst.msk [vmem:[%s720 + $0x60] sm:$0xff] %vm346, %v697
    %734 = vst.msk [vmem:[%s720 + $0x68] sm:$0xff] %vm346, %v699
    %735 = vst.msk [vmem:[%s720 + $0x70] sm:$0xff] %vm346, %v701
    %736 = vst.msk [vmem:[%s720 + $0x78] sm:$0xff] %vm346, %v703
    %737 = vrot.lane.b32.xlu0 %v206, 32
    %v738 = vpop.permute.xlu0 %737
    %739 = vrot.lane.b32.xlu0 %v212, 32
    %v740 = vpop.permute.xlu0 %739
    %741 = vrot.lane.b32.xlu0 %v218, 32
    %v742 = vpop.permute.xlu0 %741
    %743 = vrot.lane.b32.xlu0 %v224, 32
    %v744 = vpop.permute.xlu0 %743
    %745 = vrot.lane.b32.xlu0 %v230, 32
    %v746 = vpop.permute.xlu0 %745
    %747 = vrot.lane.b32.xlu0 %v236, 32
    %v748 = vpop.permute.xlu0 %747
    %749 = vrot.lane.b32.xlu0 %v242, 32
    %v750 = vpop.permute.xlu0 %749
    %751 = vrot.lane.b32.xlu0 %v248, 32
    %v752 = vpop.permute.xlu0 %751
    %753 = vrot.lane.b32.xlu0 %v254, 32
    %v754 = vpop.permute.xlu0 %753
    %755 = vrot.lane.b32.xlu0 %v260, 32
    %v756 = vpop.permute.xlu0 %755
    %757 = vrot.lane.b32.xlu0 %v266, 32
    %v758 = vpop.permute.xlu0 %757
    %759 = vrot.lane.b32.xlu0 %v272, 32
    %v760 = vpop.permute.xlu0 %759
    %761 = vrot.lane.b32.xlu0 %v333, 32
    %v762 = vpop.permute.xlu0 %761
    %763 = vrot.lane.b32.xlu0 %v337, 32
    %v764 = vpop.permute.xlu0 %763
    %765 = vrot.lane.b32.xlu0 %v341, 32
    %v766 = vpop.permute.xlu0 %765
    %767 = vrot.lane.b32.xlu0 %v345, 32
    %v768 = vpop.permute.xlu0 %767
    %s785 = scalar_lea.vmem [#allocation2], 896
    %786 = vst.msk [vmem:[%s785] sm:$0xff] %vm346, %v738
    %787 = vst.msk [vmem:[%s785 + $0x8] sm:$0xff] %vm346, %v740
    %788 = vst.msk [vmem:[%s785 + $0x10] sm:$0xff] %vm346, %v742
    %789 = vst.msk [vmem:[%s785 + $0x18] sm:$0xff] %vm346, %v744
    %790 = vst.msk [vmem:[%s785 + $0x20] sm:$0xff] %vm346, %v746
    %791 = vst.msk [vmem:[%s785 + $0x28] sm:$0xff] %vm346, %v748
    %792 = vst.msk [vmem:[%s785 + $0x30] sm:$0xff] %vm346, %v750
    %793 = vst.msk [vmem:[%s785 + $0x38] sm:$0xff] %vm346, %v752
    %794 = vst.msk [vmem:[%s785 + $0x40] sm:$0xff] %vm346, %v754
    %795 = vst.msk [vmem:[%s785 + $0x48] sm:$0xff] %vm346, %v756
    %796 = vst.msk [vmem:[%s785 + $0x50] sm:$0xff] %vm346, %v758
    %797 = vst.msk [vmem:[%s785 + $0x58] sm:$0xff] %vm346, %v760
    %798 = vst.msk [vmem:[%s785 + $0x60] sm:$0xff] %vm346, %v762
    %799 = vst.msk [vmem:[%s785 + $0x68] sm:$0xff] %vm346, %v764
    %800 = vst.msk [vmem:[%s785 + $0x70] sm:$0xff] %vm346, %v766
    %801 = vst.msk [vmem:[%s785 + $0x78] sm:$0xff] %vm346, %v768
    %v802 = vld [vmem:[%s2] sm:$0xff]
    %v803 = vld [vmem:[%s2 + $0x8] sm:$0xff]
    %v804 = vld [vmem:[%s2 + $0x10] sm:$0xff]
    %v805 = vld [vmem:[%s2 + $0x18] sm:$0xff]
    %v806 = vld [vmem:[%s2 + $0x20] sm:$0xff]
    %v807 = vld [vmem:[%s2 + $0x28] sm:$0xff]
    %v808 = vld [vmem:[%s2 + $0x30] sm:$0xff]
    %v809 = vld [vmem:[%s2 + $0x38] sm:$0xff]
    %v810 = vld [vmem:[%s2 + $0x40] sm:$0xff]
    %v811 = vld [vmem:[%s2 + $0x48] sm:$0xff]
    %v812 = vld [vmem:[%s2 + $0x50] sm:$0xff]
    %v813 = vld [vmem:[%s2 + $0x58] sm:$0xff]
    %v814 = vld [vmem:[#allocation2] sm:$0xff]
    %v815 = vld [vmem:[#allocation2 + $0x8] sm:$0xff]
    %v816 = vld [vmem:[#allocation2 + $0x10] sm:$0xff]
    %v817 = vld [vmem:[#allocation2 + $0x18] sm:$0xff]
    %v818 = vld [vmem:[#allocation2 + $0x20] sm:$0xff]
    %v819 = vld [vmem:[#allocation2 + $0x28] sm:$0xff]
    %v820 = vld [vmem:[#allocation2 + $0x30] sm:$0xff]
    %v821 = vld [vmem:[#allocation2 + $0x38] sm:$0xff]
    %v822 = vld [vmem:[#allocation2 + $0x60] sm:$0xff]
    %v823 = vld [vmem:[#allocation2 + $0x68] sm:$0xff]
    %v824 = vld [vmem:[#allocation2 + $0x70] sm:$0xff]
    %v825 = vld [vmem:[#allocation2 + $0x78] sm:$0xff]
    %v827 = vsel %vm346, %v802, 0
    %v830 = vsel %vm346, %v803, 0
    %v833 = vsel %vm346, %v804, 0
    %v836 = vsel %vm346, %v805, 0
    %v839 = vsel %vm346, %v806, 0
    %v842 = vsel %vm346, %v807, 0
    %v845 = vsel %vm346, %v808, 0
    %v848 = vsel %vm346, %v809, 0
    %v851 = vsel %vm346, %v810, 0
    %v854 = vsel %vm346, %v811, 0
    %v857 = vsel %vm346, %v812, 0
    %v860 = vsel %vm346, %v813, 0
    %862 = vmatprep.subr.mxu0 0.0
    %863 = vmatpush1.msra.mxu0 0.0
    %864 = vmatprep.subr.mxu0 0.0
    %865 = vmatpush1.msra.mxu0 0.0
    %866 = vmatprep.subr.mxu0 0.0
    %867 = vmatpush1.msra.mxu0 0.0
    %868 = vmatprep.subr.mxu0 0.0
    %869 = vmatpush1.msra.mxu0 0.0
    %870 = vmatprep.subr.mxu0 0.0
    %871 = vmatpush1.msra.mxu0 0.0
    %872 = vmatprep.subr.mxu0 0.0
    %873 = vmatpush1.msra.mxu0 0.0
    %874 = vmatprep.subr.mxu0 0.0
    %875 = vmatpush1.msra.mxu0 0.0
    %876 = vmatprep.subr.mxu0 0.0
    %877 = vmatpush1.msra.mxu0 0.0
    %878 = vmatprep.subr.mxu0 0.0
    %879 = vmatpush1.msra.mxu0 0.0
    %880 = vmatprep.subr.mxu0 0.0
    %881 = vmatpush1.msra.mxu0 0.0
    %882 = vmatprep.subr.mxu0 0.0
    %883 = vmatpush1.msra.mxu0 0.0
    %884 = vmatprep.subr.mxu0 0.0
    %885 = vmatpush1.msra.mxu0 0.0
    %886 = vmatprep.subr.mxu0 0.0
    %887 = vmatpush1.msra.mxu0 0.0
    %888 = vmatprep.subr.mxu0 0.0
    %889 = vmatpush1.msra.mxu0 0.0
    %890 = vmatprep.subr.mxu0 0.0
    %891 = vmatpush1.msra.mxu0 0.0
    %892 = vmatprep.subr.mxu0 0.0
    %893 = vmatpush1.msra.mxu0 0.0
    %894 = vmatprep.subr.mxu0 0.0
    %895 = vmatpush1.msra.mxu0 0.0
    %896 = vmatprep.subr.mxu0 0.0
    %897 = vmatpush1.msra.mxu0 0.0
    %898 = vmatprep.subr.mxu0 0.0
    %899 = vmatpush1.msra.mxu0 0.0
    %900 = vmatprep.subr.mxu0 0.0
    %901 = vmatpush1.msra.mxu0 0.0
    %902 = vmatprep.subr.mxu0 0.0
    %903 = vmatpush1.msra.mxu0 0.0
    %904 = vmatprep.subr.mxu0 0.0
    %905 = vmatpush1.msra.mxu0 0.0
    %906 = vmatprep.subr.mxu0 0.0
    %907 = vmatpush1.msra.mxu0 0.0
    %908 = vmatprep.subr.mxu0 0.0
    %909 = vmatpush1.msra.mxu0 0.0
    %910 = vmatprep.subr.mxu0 0.0
    %911 = vmatpush1.msra.mxu0 0.0
    %912 = vmatprep.subr.mxu0 0.0
    %913 = vmatpush1.msra.mxu0 0.0
    %914 = vmatprep.subr.mxu0 0.0
    %915 = vmatpush1.msra.mxu0 0.0
    %916 = vmatprep.subr.mxu0 0.0
    %917 = vmatpush1.msra.mxu0 0.0
    %918 = vmatprep.subr.mxu0 0.0
    %919 = vmatpush1.msra.mxu0 0.0
    %920 = vmatprep.subr.mxu0 0.0
    %921 = vmatpush1.msra.mxu0 0.0
    %922 = vmatprep.subr.mxu0 0.0
    %923 = vmatpush1.msra.mxu0 0.0
    %924 = vmatprep.subr.mxu0 0.0
    %925 = vmatpush1.msra.mxu0 0.0
    %926 = vmatprep.mubr.f32.mxu0 0.0
    %927 = vmatmul.mubr.f32.gmra.mrb[0].mxu0 %v827
    %v928 = vpop.f32.mrb[0].mxu0
    %v929 = vadd.f32 0.0, %v928
    %v930 = vpop.f32.mrb[0].mxu0
    %931 = vmatprep.mubr.f32.mxu0 0.0
    %932 = vmatmul.mubr.f32.gmra.mrb[0].mxu0 %v830
    %v933 = vpop.f32.mrb[0].mxu0
    %v934 = vadd.f32 0.0, %v933
    %v935 = vpop.f32.mrb[0].mxu0
    %936 = vmatprep.mubr.f32.mxu0 0.0
    %937 = vmatmul.mubr.f32.gmra.mrb[0].mxu0 %v833
    %v938 = vpop.f32.mrb[0].mxu0
    %v939 = vadd.f32 0.0, %v938
    %v940 = vpop.f32.mrb[0].mxu0
    %941 = vmatprep.mubr.f32.mxu0 0.0
    %942 = vmatmul.mubr.f32.gmra.mrb[0].mxu0 %v836
    %v943 = vpop.f32.mrb[0].mxu0
    %v944 = vadd.f32 0.0, %v943
    %v945 = vpop.f32.mrb[0].mxu0
    %946 = vmatprep.mubr.f32.mxu0 0.0
    %947 = vmatmul.mubr.f32.gmra.mrb[0].mxu0 %v839
    %v948 = vpop.f32.mrb[0].mxu0
    %v949 = vadd.f32 0.0, %v948
    %v950 = vpop.f32.mrb[0].mxu0
    %951 = vmatprep.mubr.f32.mxu0 0.0
    %952 = vmatmul.mubr.f32.gmra.mrb[0].mxu0 %v842
    %v953 = vpop.f32.mrb[0].mxu0
    %v954 = vadd.f32 0.0, %v953
    %v955 = vpop.f32.mrb[0].mxu0
    %956 = vmatprep.mubr.f32.mxu0 0.0
    %957 = vmatmul.mubr.f32.gmra.mrb[0].mxu0 %v845
    %v958 = vpop.f32.mrb[0].mxu0
    %v959 = vadd.f32 0.0, %v958
    %v960 = vpop.f32.mrb[0].mxu0
    %961 = vmatprep.mubr.f32.mxu0 0.0
    %962 = vmatmul.mubr.f32.gmra.mrb[0].mxu0 %v848
    %v963 = vpop.f32.mrb[0].mxu0
    %v964 = vadd.f32 0.0, %v963
    %v965 = vpop.f32.mrb[0].mxu0
    %966 = vmatprep.mubr.f32.mxu0 0.0
    %967 = vmatmul.mubr.f32.gmra.mrb[0].mxu0 %v851
    %v968 = vpop.f32.mrb[0].mxu0
    %v969 = vpop.f32.mrb[0].mxu0
    %970 = vmatprep.mubr.f32.mxu0 0.0
    %971 = vmatmul.mubr.f32.gmra.mrb[0].mxu0 %v854
    %v972 = vpop.f32.mrb[0].mxu0
    %v973 = vpop.f32.mrb[0].mxu0
    %974 = vmatprep.mubr.f32.mxu0 0.0
    %975 = vmatmul.mubr.f32.gmra.mrb[0].mxu0 %v857
    %v976 = vpop.f32.mrb[0].mxu0
    %v977 = vpop.f32.mrb[0].mxu0
    %978 = vmatprep.mubr.f32.mxu0 0.0
    %979 = vmatmul.mubr.f32.gmra.mrb[0].mxu0 %v860
    %v980 = vpop.f32.mrb[0].mxu0
    %v981 = vpop.f32.mrb[0].mxu0
    %982 = vdwg.mxu0
    %v983 = vadd.f32 %v814, %v929
    %v984 = vadd.f32 %v815, %v934
    %v985 = vadd.f32 %v816, %v939
    %v986 = vadd.f32 %v817, %v944
    %v987 = vadd.f32 %v818, %v949
    %v988 = vadd.f32 %v819, %v954
    %v989 = vadd.f32 %v820, %v959
    %v990 = vadd.f32 %v821, %v964
    %v991 = vxor.u32 %v983, 2147483648
    %v992 = vxor.u32 %v984, 2147483648
    %v993 = vxor.u32 %v985, 2147483648
    %v994 = vxor.u32 %v986, 2147483648
    %v995 = vxor.u32 %v987, 2147483648
    %v996 = vxor.u32 %v988, 2147483648
    %v997 = vxor.u32 %v989, 2147483648
    %v998 = vxor.u32 %v990, 2147483648
    %v999 = vmul.f32 %v991, 1.442695
    %v1000 = vpow.pop %v999
    %v1001 = vmul.f32 %v992, 1.442695
    %v1002 = vpow.pop %v1001
    %v1003 = vmul.f32 %v993, 1.442695
    %v1004 = vpow.pop %v1003
    %v1005 = vmul.f32 %v994, 1.442695
    %v1006 = vpow.pop %v1005
    %v1007 = vmul.f32 %v995, 1.442695
    %v1008 = vpow.pop %v1007
    %v1009 = vmul.f32 %v996, 1.442695
    %v1010 = vpow.pop %v1009
    %v1011 = vmul.f32 %v997, 1.442695
    %v1012 = vpow.pop %v1011
    %v1013 = vmul.f32 %v998, 1.442695
    %v1014 = vpow.pop %v1013
    %v1015 = vadd.f32 %v1000, 1.0
    %v1016 = vadd.f32 %v1002, 1.0
    %v1017 = vadd.f32 %v1004, 1.0
    %v1018 = vadd.f32 %v1006, 1.0
    %v1019 = vadd.f32 %v1008, 1.0
    %v1020 = vadd.f32 %v1010, 1.0
    %v1021 = vadd.f32 %v1012, 1.0
    %v1022 = vadd.f32 %v1014, 1.0
    %v1023 = vrcp.pop %v1015
    %v1024 = vmul.f32 1.0, %v1023
    %v1025 = vrcp.pop %v1016
    %v1026 = vmul.f32 1.0, %v1025
    %v1027 = vrcp.pop %v1017
    %v1028 = vmul.f32 1.0, %v1027
    %v1029 = vrcp.pop %v1018
    %v1030 = vmul.f32 1.0, %v1029
    %v1031 = vrcp.pop %v1019
    %v1032 = vmul.f32 1.0, %v1031
    %v1033 = vrcp.pop %v1020
    %v1034 = vmul.f32 1.0, %v1033
    %v1035 = vrcp.pop %v1021
    %v1036 = vmul.f32 1.0, %v1035
    %v1037 = vrcp.pop %v1022
    %v1038 = vmul.f32 1.0, %v1037
    %v1039 = vmul.f32 %v822, %v1032
    %v1040 = vmul.f32 %v823, %v1034
    %v1041 = vmul.f32 %v824, %v1036
    %v1042 = vmul.f32 %v825, %v1038
    %v1043 = vmul.f32 %v1024, 0.0
    %v1044 = vmul.f32 %v1026, 0.0
    %v1045 = vmul.f32 %v1028, 0.0
    %v1046 = vmul.f32 %v1030, 0.0
    %v1047 = vadd.f32 %v1039, %v1043
    %v1048 = vadd.f32 %v1040, %v1044
    %v1049 = vadd.f32 %v1041, %v1045
    %v1050 = vadd.f32 %v1042, %v1046
    %v1051 = vld [vmem:[%s427] sm:$0xff]
    %v1052 = vld [vmem:[%s427 + $0x8] sm:$0xff]
    %v1053 = vld [vmem:[%s427 + $0x10] sm:$0xff]
    %v1054 = vld [vmem:[%s427 + $0x18] sm:$0xff]
    %v1055 = vld [vmem:[%s427 + $0x20] sm:$0xff]
    %v1056 = vld [vmem:[%s427 + $0x28] sm:$0xff]
    %v1057 = vld [vmem:[%s427 + $0x30] sm:$0xff]
    %v1058 = vld [vmem:[%s427 + $0x38] sm:$0xff]
    %v1059 = vld [vmem:[%s427 + $0x60] sm:$0xff]
    %v1060 = vld [vmem:[%s427 + $0x68] sm:$0xff]
    %v1061 = vld [vmem:[%s427 + $0x70] sm:$0xff]
    %v1062 = vld [vmem:[%s427 + $0x78] sm:$0xff]
    %1063 = vmatprep.subr.mxu0 0.0
    %1064 = vmatpush1.msra.mxu0 %v1047
    %1065 = vmatprep.subr.mxu0 0.0
    %1066 = vmatpush1.msra.mxu0 %v1048
    %1067 = vmatprep.subr.mxu0 0.0
    %1068 = vmatpush1.msra.mxu0 %v1049
    %1069 = vmatprep.subr.mxu0 0.0
    %1070 = vmatpush1.msra.mxu0 %v1050
    %1071 = vmatprep.subr.mxu0 0.0
    %1072 = vmatpush1.msra.mxu0 0.0
    %1073 = vmatprep.subr.mxu0 0.0
    %1074 = vmatpush1.msra.mxu0 0.0
    %1075 = vmatprep.subr.mxu0 0.0
    %1076 = vmatpush1.msra.mxu0 0.0
    %1077 = vmatprep.subr.mxu0 0.0
    %1078 = vmatpush1.msra.mxu0 0.0
    %1079 = vmatprep.subr.mxu0 0.0
    %1080 = vmatpush1.msra.mxu0 0.0
    %1081 = vmatprep.subr.mxu0 0.0
    %1082 = vmatpush1.msra.mxu0 0.0
    %1083 = vmatprep.subr.mxu0 0.0
    %1084 = vmatpush1.msra.mxu0 0.0
    %1085 = vmatprep.subr.mxu0 0.0
    %1086 = vmatpush1.msra.mxu0 0.0
    %1087 = vmatprep.subr.mxu0 0.0
    %1088 = vmatpush1.msra.mxu0 0.0
    %1089 = vmatprep.subr.mxu0 0.0
    %1090 = vmatpush1.msra.mxu0 0.0
    %1091 = vmatprep.subr.mxu0 0.0
    %1092 = vmatpush1.msra.mxu0 0.0
    %1093 = vmatprep.subr.mxu0 0.0
    %1094 = vmatpush1.msra.mxu0 0.0
    %1095 = vmatprep.subr.mxu0 0.0
    %1096 = vmatpush1.msra.mxu0 0.0
    %1097 = vmatprep.subr.mxu0 0.0
    %1098 = vmatpush1.msra.mxu0 0.0
    %1099 = vmatprep.subr.mxu0 0.0
    %1100 = vmatpush1.msra.mxu0 0.0
    %1101 = vmatprep.subr.mxu0 0.0
    %1102 = vmatpush1.msra.mxu0 0.0
    %1103 = vmatprep.subr.mxu0 0.0
    %1104 = vmatpush1.msra.mxu0 0.0
    %1105 = vmatprep.subr.mxu0 0.0
    %1106 = vmatpush1.msra.mxu0 0.0
    %1107 = vmatprep.subr.mxu0 0.0
    %1108 = vmatpush1.msra.mxu0 0.0
    %1109 = vmatprep.subr.mxu0 0.0
    %1110 = vmatpush1.msra.mxu0 0.0
    %1111 = vmatprep.subr.mxu0 0.0
    %1112 = vmatpush1.msra.mxu0 0.0
    %1113 = vmatprep.subr.mxu0 0.0
    %1114 = vmatpush1.msra.mxu0 0.0
    %1115 = vmatprep.subr.mxu0 0.0
    %1116 = vmatpush1.msra.mxu0 0.0
    %1117 = vmatprep.subr.mxu0 0.0
    %1118 = vmatpush1.msra.mxu0 0.0
    %1119 = vmatprep.subr.mxu0 0.0
    %1120 = vmatpush1.msra.mxu0 0.0
    %1121 = vmatprep.subr.mxu0 0.0
    %1122 = vmatpush1.msra.mxu0 0.0
    %1123 = vmatprep.subr.mxu0 0.0
    %1124 = vmatpush1.msra.mxu0 0.0
    %1125 = vmatprep.subr.mxu0 0.0
    %1126 = vmatpush1.msra.mxu0 0.0
    %1127 = vmatprep.mubr.f32.mxu0 0.0
    %1128 = vmatmul.mubr.f32.gmra.mrb[0].mxu0 %v827
    %v1129 = vpop.f32.mrb[0].mxu0
    %v1130 = vadd.f32 0.0, %v1129
    %v1131 = vpop.f32.mrb[0].mxu0
    %1132 = vmatprep.mubr.f32.mxu0 0.0
    %1133 = vmatmul.mubr.f32.gmra.mrb[0].mxu0 %v830
    %v1134 = vpop.f32.mrb[0].mxu0
    %v1135 = vadd.f32 0.0, %v1134
    %v1136 = vpop.f32.mrb[0].mxu0
    %1137 = vmatprep.mubr.f32.mxu0 0.0
    %1138 = vmatmul.mubr.f32.gmra.mrb[0].mxu0 %v833
    %v1139 = vpop.f32.mrb[0].mxu0
    %v1140 = vadd.f32 0.0, %v1139
    %v1141 = vpop.f32.mrb[0].mxu0
    %1142 = vmatprep.mubr.f32.mxu0 0.0
    %1143 = vmatmul.mubr.f32.gmra.mrb[0].mxu0 %v836
    %v1144 = vpop.f32.mrb[0].mxu0
    %v1145 = vadd.f32 0.0, %v1144
    %v1146 = vpop.f32.mrb[0].mxu0
    %1147 = vmatprep.mubr.f32.mxu0 0.0
    %1148 = vmatmul.mubr.f32.gmra.mrb[0].mxu0 %v839
    %v1149 = vpop.f32.mrb[0].mxu0
    %v1150 = vadd.f32 0.0, %v1149
    %v1151 = vpop.f32.mrb[0].mxu0
    %1152 = vmatprep.mubr.f32.mxu0 0.0
    %1153 = vmatmul.mubr.f32.gmra.mrb[0].mxu0 %v842
    %v1154 = vpop.f32.mrb[0].mxu0
    %v1155 = vadd.f32 0.0, %v1154
    %v1156 = vpop.f32.mrb[0].mxu0
    %1157 = vmatprep.mubr.f32.mxu0 0.0
    %1158 = vmatmul.mubr.f32.gmra.mrb[0].mxu0 %v845
    %v1159 = vpop.f32.mrb[0].mxu0
    %v1160 = vadd.f32 0.0, %v1159
    %v1161 = vpop.f32.mrb[0].mxu0
    %1162 = vmatprep.mubr.f32.mxu0 0.0
    %1163 = vmatmul.mubr.f32.gmra.mrb[0].mxu0 %v848
    %v1164 = vpop.f32.mrb[0].mxu0
    %v1165 = vadd.f32 0.0, %v1164
    %v1166 = vpop.f32.mrb[0].mxu0
    %1167 = vmatprep.mubr.f32.mxu0 0.0
    %1168 = vmatmul.mubr.f32.gmra.mrb[0].mxu0 %v851
    %v1169 = vpop.f32.mrb[0].mxu0
    %v1170 = vpop.f32.mrb[0].mxu0
    %1171 = vmatprep.mubr.f32.mxu0 0.0
    %1172 = vmatmul.mubr.f32.gmra.mrb[0].mxu0 %v854
    %v1173 = vpop.f32.mrb[0].mxu0
    %v1174 = vpop.f32.mrb[0].mxu0
    %1175 = vmatprep.mubr.f32.mxu0 0.0
    %1176 = vmatmul.mubr.f32.gmra.mrb[0].mxu0 %v857
    %v1177 = vpop.f32.mrb[0].mxu0
    %v1178 = vpop.f32.mrb[0].mxu0
    %1179 = vmatprep.mubr.f32.mxu0 0.0
    %1180 = vmatmul.mubr.f32.gmra.mrb[0].mxu0 %v860
    %v1181 = vpop.f32.mrb[0].mxu0
    %v1182 = vpop.f32.mrb[0].mxu0
    %1183 = vdwg.mxu0
    %v1184 = vadd.f32 %v1051, %v1130
    %v1185 = vadd.f32 %v1052, %v1135
    %v1186 = vadd.f32 %v1053, %v1140
    %v1187 = vadd.f32 %v1054, %v1145
    %v1188 = vadd.f32 %v1055, %v1150
    %v1189 = vadd.f32 %v1056, %v1155
    %v1190 = vadd.f32 %v1057, %v1160
    %v1191 = vadd.f32 %v1058, %v1165
    %v1192 = vxor.u32 %v1184, 2147483648
    %v1193 = vxor.u32 %v1185, 2147483648
    %v1194 = vxor.u32 %v1186, 2147483648
    %v1195 = vxor.u32 %v1187, 2147483648
    %v1196 = vxor.u32 %v1188, 2147483648
    %v1197 = vxor.u32 %v1189, 2147483648
    %v1198 = vxor.u32 %v1190, 2147483648
    %v1199 = vxor.u32 %v1191, 2147483648
    %v1200 = vmul.f32 %v1192, 1.442695
    %v1201 = vpow.pop %v1200
    %v1202 = vmul.f32 %v1193, 1.442695
    %v1203 = vpow.pop %v1202
    %v1204 = vmul.f32 %v1194, 1.442695
    %v1205 = vpow.pop %v1204
    %v1206 = vmul.f32 %v1195, 1.442695
    %v1207 = vpow.pop %v1206
    %v1208 = vmul.f32 %v1196, 1.442695
    %v1209 = vpow.pop %v1208
    %v1210 = vmul.f32 %v1197, 1.442695
    %v1211 = vpow.pop %v1210
    %v1212 = vmul.f32 %v1198, 1.442695
    %v1213 = vpow.pop %v1212
    %v1214 = vmul.f32 %v1199, 1.442695
    %v1215 = vpow.pop %v1214
    %v1216 = vadd.f32 %v1201, 1.0
    %v1217 = vadd.f32 %v1203, 1.0
    %v1218 = vadd.f32 %v1205, 1.0
    %v1219 = vadd.f32 %v1207, 1.0
    %v1220 = vadd.f32 %v1209, 1.0
    %v1221 = vadd.f32 %v1211, 1.0
    %v1222 = vadd.f32 %v1213, 1.0
    %v1223 = vadd.f32 %v1215, 1.0
    %v1224 = vrcp.pop %v1216
    %v1225 = vmul.f32 1.0, %v1224
    %v1226 = vrcp.pop %v1217
    %v1227 = vmul.f32 1.0, %v1226
    %v1228 = vrcp.pop %v1218
    %v1229 = vmul.f32 1.0, %v1228
    %v1230 = vrcp.pop %v1219
    %v1231 = vmul.f32 1.0, %v1230
    %v1232 = vrcp.pop %v1220
    %v1233 = vmul.f32 1.0, %v1232
    %v1234 = vrcp.pop %v1221
    %v1235 = vmul.f32 1.0, %v1234
    %v1236 = vrcp.pop %v1222
    %v1237 = vmul.f32 1.0, %v1236
    %v1238 = vrcp.pop %v1223
    %v1239 = vmul.f32 1.0, %v1238
    %v1240 = vmul.f32 %v1059, %v1233
    %v1241 = vmul.f32 %v1060, %v1235
    %v1242 = vmul.f32 %v1061, %v1237
    %v1243 = vmul.f32 %v1062, %v1239
    %v1244 = vmul.f32 %v1047, %v1225
    %v1245 = vmul.f32 %v1048, %v1227
    %v1246 = vmul.f32 %v1049, %v1229
    %v1247 = vmul.f32 %v1050, %v1231
    %v1248 = vadd.f32 %v1240, %v1244
    %v1249 = vadd.f32 %v1241, %v1245
    %v1250 = vadd.f32 %v1242, %v1246
    %v1251 = vadd.f32 %v1243, %v1247
    %v1252 = vld [vmem:[%s492] sm:$0xff]
    %v1253 = vld [vmem:[%s492 + $0x8] sm:$0xff]
    %v1254 = vld [vmem:[%s492 + $0x10] sm:$0xff]
    %v1255 = vld [vmem:[%s492 + $0x18] sm:$0xff]
    %v1256 = vld [vmem:[%s492 + $0x20] sm:$0xff]
    %v1257 = vld [vmem:[%s492 + $0x28] sm:$0xff]
    %v1258 = vld [vmem:[%s492 + $0x30] sm:$0xff]
    %v1259 = vld [vmem:[%s492 + $0x38] sm:$0xff]
    %v1260 = vld [vmem:[%s492 + $0x60] sm:$0xff]
    %v1261 = vld [vmem:[%s492 + $0x68] sm:$0xff]
    %v1262 = vld [vmem:[%s492 + $0x70] sm:$0xff]
    %v1263 = vld [vmem:[%s492 + $0x78] sm:$0xff]
    %1264 = vmatprep.subr.mxu0 0.0
    %1265 = vmatpush1.msra.mxu0 %v1248
    %1266 = vmatprep.subr.mxu0 0.0
    %1267 = vmatpush1.msra.mxu0 %v1249
    %1268 = vmatprep.subr.mxu0 0.0
    %1269 = vmatpush1.msra.mxu0 %v1250
    %1270 = vmatprep.subr.mxu0 0.0
    %1271 = vmatpush1.msra.mxu0 %v1251
    %1272 = vmatprep.subr.mxu0 0.0
    %1273 = vmatpush1.msra.mxu0 0.0
    %1274 = vmatprep.subr.mxu0 0.0
    %1275 = vmatpush1.msra.mxu0 0.0
    %1276 = vmatprep.subr.mxu0 0.0
    %1277 = vmatpush1.msra.mxu0 0.0
    %1278 = vmatprep.subr.mxu0 0.0
    %1279 = vmatpush1.msra.mxu0 0.0
    %1280 = vmatprep.subr.mxu0 0.0
    %1281 = vmatpush1.msra.mxu0 0.0
    %1282 = vmatprep.subr.mxu0 0.0
    %1283 = vmatpush1.msra.mxu0 0.0
    %1284 = vmatprep.subr.mxu0 0.0
    %1285 = vmatpush1.msra.mxu0 0.0
    %1286 = vmatprep.subr.mxu0 0.0
    %1287 = vmatpush1.msra.mxu0 0.0
    %1288 = vmatprep.subr.mxu0 0.0
    %1289 = vmatpush1.msra.mxu0 0.0
    %1290 = vmatprep.subr.mxu0 0.0
    %1291 = vmatpush1.msra.mxu0 0.0
    %1292 = vmatprep.subr.mxu0 0.0
    %1293 = vmatpush1.msra.mxu0 0.0
    %1294 = vmatprep.subr.mxu0 0.0
    %1295 = vmatpush1.msra.mxu0 0.0
    %1296 = vmatprep.subr.mxu0 0.0
    %1297 = vmatpush1.msra.mxu0 0.0
    %1298 = vmatprep.subr.mxu0 0.0
    %1299 = vmatpush1.msra.mxu0 0.0
    %1300 = vmatprep.subr.mxu0 0.0
    %1301 = vmatpush1.msra.mxu0 0.0
    %1302 = vmatprep.subr.mxu0 0.0
    %1303 = vmatpush1.msra.mxu0 0.0
    %1304 = vmatprep.subr.mxu0 0.0
    %1305 = vmatpush1.msra.mxu0 0.0
    %1306 = vmatprep.subr.mxu0 0.0
    %1307 = vmatpush1.msra.mxu0 0.0
    %1308 = vmatprep.subr.mxu0 0.0
    %1309 = vmatpush1.msra.mxu0 0.0
    %1310 = vmatprep.subr.mxu0 0.0
    %1311 = vmatpush1.msra.mxu0 0.0
    %1312 = vmatprep.subr.mxu0 0.0
    %1313 = vmatpush1.msra.mxu0 0.0
    %1314 = vmatprep.subr.mxu0 0.0
    %1315 = vmatpush1.msra.mxu0 0.0
    %1316 = vmatprep.subr.mxu0 0.0
    %1317 = vmatpush1.msra.mxu0 0.0
    %1318 = vmatprep.subr.mxu0 0.0
    %1319 = vmatpush1.msra.mxu0 0.0
    %1320 = vmatprep.subr.mxu0 0.0
    %1321 = vmatpush1.msra.mxu0 0.0
    %1322 = vmatprep.subr.mxu0 0.0
    %1323 = vmatpush1.msra.mxu0 0.0
    %1324 = vmatprep.subr.mxu0 0.0
    %1325 = vmatpush1.msra.mxu0 0.0
    %1326 = vmatprep.subr.mxu0 0.0
    %1327 = vmatpush1.msra.mxu0 0.0
    %1328 = vmatprep.mubr.f32.mxu0 0.0
    %1329 = vmatmul.mubr.f32.gmra.mrb[0].mxu0 %v827
    %v1330 = vpop.f32.mrb[0].mxu0
    %v1331 = vadd.f32 0.0, %v1330
    %v1332 = vpop.f32.mrb[0].mxu0
    %1333 = vmatprep.mubr.f32.mxu0 0.0
    %1334 = vmatmul.mubr.f32.gmra.mrb[0].mxu0 %v830
    %v1335 = vpop.f32.mrb[0].mxu0
    %v1336 = vadd.f32 0.0, %v1335
    %v1337 = vpop.f32.mrb[0].mxu0
    %1338 = vmatprep.mubr.f32.mxu0 0.0
    %1339 = vmatmul.mubr.f32.gmra.mrb[0].mxu0 %v833
    %v1340 = vpop.f32.mrb[0].mxu0
    %v1341 = vadd.f32 0.0, %v1340
    %v1342 = vpop.f32.mrb[0].mxu0
    %1343 = vmatprep.mubr.f32.mxu0 0.0
    %1344 = vmatmul.mubr.f32.gmra.mrb[0].mxu0 %v836
    %v1345 = vpop.f32.mrb[0].mxu0
    %v1346 = vadd.f32 0.0, %v1345
    %v1347 = vpop.f32.mrb[0].mxu0
    %1348 = vmatprep.mubr.f32.mxu0 0.0
    %1349 = vmatmul.mubr.f32.gmra.mrb[0].mxu0 %v839
    %v1350 = vpop.f32.mrb[0].mxu0
    %v1351 = vadd.f32 0.0, %v1350
    %v1352 = vpop.f32.mrb[0].mxu0
    %1353 = vmatprep.mubr.f32.mxu0 0.0
    %1354 = vmatmul.mubr.f32.gmra.mrb[0].mxu0 %v842
    %v1355 = vpop.f32.mrb[0].mxu0
    %v1356 = vadd.f32 0.0, %v1355
    %v1357 = vpop.f32.mrb[0].mxu0
    %1358 = vmatprep.mubr.f32.mxu0 0.0
    %1359 = vmatmul.mubr.f32.gmra.mrb[0].mxu0 %v845
    %v1360 = vpop.f32.mrb[0].mxu0
    %v1361 = vadd.f32 0.0, %v1360
    %v1362 = vpop.f32.mrb[0].mxu0
    %1363 = vmatprep.mubr.f32.mxu0 0.0
    %1364 = vmatmul.mubr.f32.gmra.mrb[0].mxu0 %v848
    %v1365 = vpop.f32.mrb[0].mxu0
    %v1366 = vadd.f32 0.0, %v1365
    %v1367 = vpop.f32.mrb[0].mxu0
    %1368 = vmatprep.mubr.f32.mxu0 0.0
    %1369 = vmatmul.mubr.f32.gmra.mrb[0].mxu0 %v851
    %v1370 = vpop.f32.mrb[0].mxu0
    %v1371 = vpop.f32.mrb[0].mxu0
    %1372 = vmatprep.mubr.f32.mxu0 0.0
    %1373 = vmatmul.mubr.f32.gmra.mrb[0].mxu0 %v854
    %v1374 = vpop.f32.mrb[0].mxu0
    %v1375 = vpop.f32.mrb[0].mxu0
    %1376 = vmatprep.mubr.f32.mxu0 0.0
    %1377 = vmatmul.mubr.f32.gmra.mrb[0].mxu0 %v857
    %v1378 = vpop.f32.mrb[0].mxu0
    %v1379 = vpop.f32.mrb[0].mxu0
    %1380 = vmatprep.mubr.f32.mxu0 0.0
    %1381 = vmatmul.mubr.f32.gmra.mrb[0].mxu0 %v860
    %v1382 = vpop.f32.mrb[0].mxu0
    %v1383 = vpop.f32.mrb[0].mxu0
    %1384 = vdwg.mxu0
    %v1385 = vadd.f32 %v1252, %v1331
    %v1386 = vadd.f32 %v1253, %v1336
    %v1387 = vadd.f32 %v1254, %v1341
    %v1388 = vadd.f32 %v1255, %v1346
    %v1389 = vadd.f32 %v1256, %v1351
    %v1390 = vadd.f32 %v1257, %v1356
    %v1391 = vadd.f32 %v1258, %v1361
    %v1392 = vadd.f32 %v1259, %v1366
    %v1393 = vxor.u32 %v1385, 2147483648
    %v1394 = vxor.u32 %v1386, 2147483648
    %v1395 = vxor.u32 %v1387, 2147483648
    %v1396 = vxor.u32 %v1388, 2147483648
    %v1397 = vxor.u32 %v1389, 2147483648
    %v1398 = vxor.u32 %v1390, 2147483648
    %v1399 = vxor.u32 %v1391, 2147483648
    %v1400 = vxor.u32 %v1392, 2147483648
    %v1401 = vmul.f32 %v1393, 1.442695
    %v1402 = vpow.pop %v1401
    %v1403 = vmul.f32 %v1394, 1.442695
    %v1404 = vpow.pop %v1403
    %v1405 = vmul.f32 %v1395, 1.442695
    %v1406 = vpow.pop %v1405
    %v1407 = vmul.f32 %v1396, 1.442695
    %v1408 = vpow.pop %v1407
    %v1409 = vmul.f32 %v1397, 1.442695
    %v1410 = vpow.pop %v1409
    %v1411 = vmul.f32 %v1398, 1.442695
    %v1412 = vpow.pop %v1411
    %v1413 = vmul.f32 %v1399, 1.442695
    %v1414 = vpow.pop %v1413
    %v1415 = vmul.f32 %v1400, 1.442695
    %v1416 = vpow.pop %v1415
    %v1417 = vadd.f32 %v1402, 1.0
    %v1418 = vadd.f32 %v1404, 1.0
    %v1419 = vadd.f32 %v1406, 1.0
    %v1420 = vadd.f32 %v1408, 1.0
    %v1421 = vadd.f32 %v1410, 1.0
    %v1422 = vadd.f32 %v1412, 1.0
    %v1423 = vadd.f32 %v1414, 1.0
    %v1424 = vadd.f32 %v1416, 1.0
    %v1425 = vrcp.pop %v1417
    %v1426 = vmul.f32 1.0, %v1425
    %v1427 = vrcp.pop %v1418
    %v1428 = vmul.f32 1.0, %v1427
    %v1429 = vrcp.pop %v1419
    %v1430 = vmul.f32 1.0, %v1429
    %v1431 = vrcp.pop %v1420
    %v1432 = vmul.f32 1.0, %v1431
    %v1433 = vrcp.pop %v1421
    %v1434 = vmul.f32 1.0, %v1433
    %v1435 = vrcp.pop %v1422
    %v1436 = vmul.f32 1.0, %v1435
    %v1437 = vrcp.pop %v1423
    %v1438 = vmul.f32 1.0, %v1437
    %v1439 = vrcp.pop %v1424
    %v1440 = vmul.f32 1.0, %v1439
    %v1441 = vmul.f32 %v1260, %v1434
    %v1442 = vmul.f32 %v1261, %v1436
    %v1443 = vmul.f32 %v1262, %v1438
    %v1444 = vmul.f32 %v1263, %v1440
    %v1445 = vmul.f32 %v1248, %v1426
    %v1446 = vmul.f32 %v1249, %v1428
    %v1447 = vmul.f32 %v1250, %v1430
    %v1448 = vmul.f32 %v1251, %v1432
    %v1449 = vadd.f32 %v1441, %v1445
    %v1450 = vadd.f32 %v1442, %v1446
    %v1451 = vadd.f32 %v1443, %v1447
    %v1452 = vadd.f32 %v1444, %v1448
    %v1453 = vld [vmem:[%s557] sm:$0xff]
    %v1454 = vld [vmem:[%s557 + $0x8] sm:$0xff]
    %v1455 = vld [vmem:[%s557 + $0x10] sm:$0xff]
    %v1456 = vld [vmem:[%s557 + $0x18] sm:$0xff]
    %v1457 = vld [vmem:[%s557 + $0x20] sm:$0xff]
    %v1458 = vld [vmem:[%s557 + $0x28] sm:$0xff]
    %v1459 = vld [vmem:[%s557 + $0x30] sm:$0xff]
    %v1460 = vld [vmem:[%s557 + $0x38] sm:$0xff]
    %v1461 = vld [vmem:[%s557 + $0x60] sm:$0xff]
    %v1462 = vld [vmem:[%s557 + $0x68] sm:$0xff]
    %v1463 = vld [vmem:[%s557 + $0x70] sm:$0xff]
    %v1464 = vld [vmem:[%s557 + $0x78] sm:$0xff]
    %1465 = vmatprep.subr.mxu0 0.0
    %1466 = vmatpush1.msra.mxu0 %v1449
    %1467 = vmatprep.subr.mxu0 0.0
    %1468 = vmatpush1.msra.mxu0 %v1450
    %1469 = vmatprep.subr.mxu0 0.0
    %1470 = vmatpush1.msra.mxu0 %v1451
    %1471 = vmatprep.subr.mxu0 0.0
    %1472 = vmatpush1.msra.mxu0 %v1452
    %1473 = vmatprep.subr.mxu0 0.0
    %1474 = vmatpush1.msra.mxu0 0.0
    %1475 = vmatprep.subr.mxu0 0.0
    %1476 = vmatpush1.msra.mxu0 0.0
    %1477 = vmatprep.subr.mxu0 0.0
    %1478 = vmatpush1.msra.mxu0 0.0
    %1479 = vmatprep.subr.mxu0 0.0
    %1480 = vmatpush1.msra.mxu0 0.0
    %1481 = vmatprep.subr.mxu0 0.0
    %1482 = vmatpush1.msra.mxu0 0.0
    %1483 = vmatprep.subr.mxu0 0.0
    %1484 = vmatpush1.msra.mxu0 0.0
    %1485 = vmatprep.subr.mxu0 0.0
    %1486 = vmatpush1.msra.mxu0 0.0
    %1487 = vmatprep.subr.mxu0 0.0
    %1488 = vmatpush1.msra.mxu0 0.0
    %1489 = vmatprep.subr.mxu0 0.0
    %1490 = vmatpush1.msra.mxu0 0.0
    %1491 = vmatprep.subr.mxu0 0.0
    %1492 = vmatpush1.msra.mxu0 0.0
    %1493 = vmatprep.subr.mxu0 0.0
    %1494 = vmatpush1.msra.mxu0 0.0
    %1495 = vmatprep.subr.mxu0 0.0
    %1496 = vmatpush1.msra.mxu0 0.0
    %1497 = vmatprep.subr.mxu0 0.0
    %1498 = vmatpush1.msra.mxu0 0.0
    %1499 = vmatprep.subr.mxu0 0.0
    %1500 = vmatpush1.msra.mxu0 0.0
    %1501 = vmatprep.subr.mxu0 0.0
    %1502 = vmatpush1.msra.mxu0 0.0
    %1503 = vmatprep.subr.mxu0 0.0
    %1504 = vmatpush1.msra.mxu0 0.0
    %1505 = vmatprep.subr.mxu0 0.0
    %1506 = vmatpush1.msra.mxu0 0.0
    %1507 = vmatprep.subr.mxu0 0.0
    %1508 = vmatpush1.msra.mxu0 0.0
    %1509 = vmatprep.subr.mxu0 0.0
    %1510 = vmatpush1.msra.mxu0 0.0
    %1511 = vmatprep.subr.mxu0 0.0
    %1512 = vmatpush1.msra.mxu0 0.0
    %1513 = vmatprep.subr.mxu0 0.0
    %1514 = vmatpush1.msra.mxu0 0.0
    %1515 = vmatprep.subr.mxu0 0.0
    %1516 = vmatpush1.msra.mxu0 0.0
    %1517 = vmatprep.subr.mxu0 0.0
    %1518 = vmatpush1.msra.mxu0 0.0
    %1519 = vmatprep.subr.mxu0 0.0
    %1520 = vmatpush1.msra.mxu0 0.0
    %1521 = vmatprep.subr.mxu0 0.0
    %1522 = vmatpush1.msra.mxu0 0.0
    %1523 = vmatprep.subr.mxu0 0.0
    %1524 = vmatpush1.msra.mxu0 0.0
    %1525 = vmatprep.subr.mxu0 0.0
    %1526 = vmatpush1.msra.mxu0 0.0
    %1527 = vmatprep.subr.mxu0 0.0
    %1528 = vmatpush1.msra.mxu0 0.0
    %1529 = vmatprep.mubr.f32.mxu0 0.0
    %1530 = vmatmul.mubr.f32.gmra.mrb[0].mxu0 %v827
    %v1531 = vpop.f32.mrb[0].mxu0
    %v1532 = vadd.f32 0.0, %v1531
    %v1533 = vpop.f32.mrb[0].mxu0
    %1534 = vmatprep.mubr.f32.mxu0 0.0
    %1535 = vmatmul.mubr.f32.gmra.mrb[0].mxu0 %v830
    %v1536 = vpop.f32.mrb[0].mxu0
    %v1537 = vadd.f32 0.0, %v1536
    %v1538 = vpop.f32.mrb[0].mxu0
    %1539 = vmatprep.mubr.f32.mxu0 0.0
    %1540 = vmatmul.mubr.f32.gmra.mrb[0].mxu0 %v833
    %v1541 = vpop.f32.mrb[0].mxu0
    %v1542 = vadd.f32 0.0, %v1541
    %v1543 = vpop.f32.mrb[0].mxu0
    %1544 = vmatprep.mubr.f32.mxu0 0.0
    %1545 = vmatmul.mubr.f32.gmra.mrb[0].mxu0 %v836
    %v1546 = vpop.f32.mrb[0].mxu0
    %v1547 = vadd.f32 0.0, %v1546
    %v1548 = vpop.f32.mrb[0].mxu0
    %1549 = vmatprep.mubr.f32.mxu0 0.0
    %1550 = vmatmul.mubr.f32.gmra.mrb[0].mxu0 %v839
    %v1551 = vpop.f32.mrb[0].mxu0
    %v1552 = vadd.f32 0.0, %v1551
    %v1553 = vpop.f32.mrb[0].mxu0
    %1554 = vmatprep.mubr.f32.mxu0 0.0
    %1555 = vmatmul.mubr.f32.gmra.mrb[0].mxu0 %v842
    %v1556 = vpop.f32.mrb[0].mxu0
    %v1557 = vadd.f32 0.0, %v1556
    %v1558 = vpop.f32.mrb[0].mxu0
    %1559 = vmatprep.mubr.f32.mxu0 0.0
    %1560 = vmatmul.mubr.f32.gmra.mrb[0].mxu0 %v845
    %v1561 = vpop.f32.mrb[0].mxu0
    %v1562 = vadd.f32 0.0, %v1561
    %v1563 = vpop.f32.mrb[0].mxu0
    %1564 = vmatprep.mubr.f32.mxu0 0.0
    %1565 = vmatmul.mubr.f32.gmra.mrb[0].mxu0 %v848
    %v1566 = vpop.f32.mrb[0].mxu0
    %v1567 = vadd.f32 0.0, %v1566
    %v1568 = vpop.f32.mrb[0].mxu0
    %1569 = vmatprep.mubr.f32.mxu0 0.0
    %1570 = vmatmul.mubr.f32.gmra.mrb[0].mxu0 %v851
    %v1571 = vpop.f32.mrb[0].mxu0
    %v1572 = vpop.f32.mrb[0].mxu0
    %1573 = vmatprep.mubr.f32.mxu0 0.0
    %1574 = vmatmul.mubr.f32.gmra.mrb[0].mxu0 %v854
    %v1575 = vpop.f32.mrb[0].mxu0
    %v1576 = vpop.f32.mrb[0].mxu0
    %1577 = vmatprep.mubr.f32.mxu0 0.0
    %1578 = vmatmul.mubr.f32.gmra.mrb[0].mxu0 %v857
    %v1579 = vpop.f32.mrb[0].mxu0
    %v1580 = vpop.f32.mrb[0].mxu0
    %1581 = vmatprep.mubr.f32.mxu0 0.0
    %1582 = vmatmul.mubr.f32.gmra.mrb[0].mxu0 %v860
    %v1583 = vpop.f32.mrb[0].mxu0
    %v1584 = vpop.f32.mrb[0].mxu0
    %1585 = vdwg.mxu0
    %v1586 = vadd.f32 %v1453, %v1532
    %v1587 = vadd.f32 %v1454, %v1537
    %v1588 = vadd.f32 %v1455, %v1542
    %v1589 = vadd.f32 %v1456, %v1547
    %v1590 = vadd.f32 %v1457, %v1552
    %v1591 = vadd.f32 %v1458, %v1557
    %v1592 = vadd.f32 %v1459, %v1562
    %v1593 = vadd.f32 %v1460, %v1567
    %v1594 = vxor.u32 %v1586, 2147483648
    %v1595 = vxor.u32 %v1587, 2147483648
    %v1596 = vxor.u32 %v1588, 2147483648
    %v1597 = vxor.u32 %v1589, 2147483648
    %v1598 = vxor.u32 %v1590, 2147483648
    %v1599 = vxor.u32 %v1591, 2147483648
    %v1600 = vxor.u32 %v1592, 2147483648
    %v1601 = vxor.u32 %v1593, 2147483648
    %v1602 = vmul.f32 %v1594, 1.442695
    %v1603 = vpow.pop %v1602
    %v1604 = vmul.f32 %v1595, 1.442695
    %v1605 = vpow.pop %v1604
    %v1606 = vmul.f32 %v1596, 1.442695
    %v1607 = vpow.pop %v1606
    %v1608 = vmul.f32 %v1597, 1.442695
    %v1609 = vpow.pop %v1608
    %v1610 = vmul.f32 %v1598, 1.442695
    %v1611 = vpow.pop %v1610
    %v1612 = vmul.f32 %v1599, 1.442695
    %v1613 = vpow.pop %v1612
    %v1614 = vmul.f32 %v1600, 1.442695
    %v1615 = vpow.pop %v1614
    %v1616 = vmul.f32 %v1601, 1.442695
    %v1617 = vpow.pop %v1616
    %v1618 = vadd.f32 %v1603, 1.0
    %v1619 = vadd.f32 %v1605, 1.0
    %v1620 = vadd.f32 %v1607, 1.0
    %v1621 = vadd.f32 %v1609, 1.0
    %v1622 = vadd.f32 %v1611, 1.0
    %v1623 = vadd.f32 %v1613, 1.0
    %v1624 = vadd.f32 %v1615, 1.0
    %v1625 = vadd.f32 %v1617, 1.0
    %v1626 = vrcp.pop %v1618
    %v1627 = vmul.f32 1.0, %v1626
    %v1628 = vrcp.pop %v1619
    %v1629 = vmul.f32 1.0, %v1628
    %v1630 = vrcp.pop %v1620
    %v1631 = vmul.f32 1.0, %v1630
    %v1632 = vrcp.pop %v1621
    %v1633 = vmul.f32 1.0, %v1632
    %v1634 = vrcp.pop %v1622
    %v1635 = vmul.f32 1.0, %v1634
    %v1636 = vrcp.pop %v1623
    %v1637 = vmul.f32 1.0, %v1636
    %v1638 = vrcp.pop %v1624
    %v1639 = vmul.f32 1.0, %v1638
    %v1640 = vrcp.pop %v1625
    %v1641 = vmul.f32 1.0, %v1640
    %v1642 = vmul.f32 %v1461, %v1635
    %v1643 = vmul.f32 %v1462, %v1637
    %v1644 = vmul.f32 %v1463, %v1639
    %v1645 = vmul.f32 %v1464, %v1641
    %v1646 = vmul.f32 %v1449, %v1627
    %v1647 = vmul.f32 %v1450, %v1629
    %v1648 = vmul.f32 %v1451, %v1631
    %v1649 = vmul.f32 %v1452, %v1633
    %v1650 = vadd.f32 %v1642, %v1646
    %v1651 = vadd.f32 %v1643, %v1647
    %v1652 = vadd.f32 %v1644, %v1648
    %v1653 = vadd.f32 %v1645, %v1649
    %v1654 = vld [vmem:[%s574] sm:$0xff]
    %v1655 = vld [vmem:[%s574 + $0x8] sm:$0xff]
    %v1656 = vld [vmem:[%s574 + $0x10] sm:$0xff]
    %v1657 = vld [vmem:[%s574 + $0x18] sm:$0xff]
    %v1658 = vld [vmem:[%s574 + $0x20] sm:$0xff]
    %v1659 = vld [vmem:[%s574 + $0x28] sm:$0xff]
    %v1660 = vld [vmem:[%s574 + $0x30] sm:$0xff]
    %v1661 = vld [vmem:[%s574 + $0x38] sm:$0xff]
    %v1662 = vld [vmem:[%s574 + $0x60] sm:$0xff]
    %v1663 = vld [vmem:[%s574 + $0x68] sm:$0xff]
    %v1664 = vld [vmem:[%s574 + $0x70] sm:$0xff]
    %v1665 = vld [vmem:[%s574 + $0x78] sm:$0xff]
    %1666 = vmatprep.subr.mxu0 0.0
    %1667 = vmatpush1.msra.mxu0 %v1650
    %1668 = vmatprep.subr.mxu0 0.0
    %1669 = vmatpush1.msra.mxu0 %v1651
    %1670 = vmatprep.subr.mxu0 0.0
    %1671 = vmatpush1.msra.mxu0 %v1652
    %1672 = vmatprep.subr.mxu0 0.0
    %1673 = vmatpush1.msra.mxu0 %v1653
    %1674 = vmatprep.subr.mxu0 0.0
    %1675 = vmatpush1.msra.mxu0 0.0
    %1676 = vmatprep.subr.mxu0 0.0
    %1677 = vmatpush1.msra.mxu0 0.0
    %1678 = vmatprep.subr.mxu0 0.0
    %1679 = vmatpush1.msra.mxu0 0.0
    %1680 = vmatprep.subr.mxu0 0.0
    %1681 = vmatpush1.msra.mxu0 0.0
    %1682 = vmatprep.subr.mxu0 0.0
    %1683 = vmatpush1.msra.mxu0 0.0
    %1684 = vmatprep.subr.mxu0 0.0
    %1685 = vmatpush1.msra.mxu0 0.0
    %1686 = vmatprep.subr.mxu0 0.0
    %1687 = vmatpush1.msra.mxu0 0.0
    %1688 = vmatprep.subr.mxu0 0.0
    %1689 = vmatpush1.msra.mxu0 0.0
    %1690 = vmatprep.subr.mxu0 0.0
    %1691 = vmatpush1.msra.mxu0 0.0
    %1692 = vmatprep.subr.mxu0 0.0
    %1693 = vmatpush1.msra.mxu0 0.0
    %1694 = vmatprep.subr.mxu0 0.0
    %1695 = vmatpush1.msra.mxu0 0.0
    %1696 = vmatprep.subr.mxu0 0.0
    %1697 = vmatpush1.msra.mxu0 0.0
    %1698 = vmatprep.subr.mxu0 0.0
    %1699 = vmatpush1.msra.mxu0 0.0
    %1700 = vmatprep.subr.mxu0 0.0
    %1701 = vmatpush1.msra.mxu0 0.0
    %1702 = vmatprep.subr.mxu0 0.0
    %1703 = vmatpush1.msra.mxu0 0.0
    %1704 = vmatprep.subr.mxu0 0.0
    %1705 = vmatpush1.msra.mxu0 0.0
    %1706 = vmatprep.subr.mxu0 0.0
    %1707 = vmatpush1.msra.mxu0 0.0
    %1708 = vmatprep.subr.mxu0 0.0
    %1709 = vmatpush1.msra.mxu0 0.0
    %1710 = vmatprep.subr.mxu0 0.0
    %1711 = vmatpush1.msra.mxu0 0.0
    %1712 = vmatprep.subr.mxu0 0.0
    %1713 = vmatpush1.msra.mxu0 0.0
    %1714 = vmatprep.subr.mxu0 0.0
    %1715 = vmatpush1.msra.mxu0 0.0
    %1716 = vmatprep.subr.mxu0 0.0
    %1717 = vmatpush1.msra.mxu0 0.0
    %1718 = vmatprep.subr.mxu0 0.0
    %1719 = vmatpush1.msra.mxu0 0.0
    %1720 = vmatprep.subr.mxu0 0.0
    %1721 = vmatpush1.msra.mxu0 0.0
    %1722 = vmatprep.subr.mxu0 0.0
    %1723 = vmatpush1.msra.mxu0 0.0
    %1724 = vmatprep.subr.mxu0 0.0
    %1725 = vmatpush1.msra.mxu0 0.0
    %1726 = vmatprep.subr.mxu0 0.0
    %1727 = vmatpush1.msra.mxu0 0.0
    %1728 = vmatprep.subr.mxu0 0.0
    %1729 = vmatpush1.msra.mxu0 0.0
    %1730 = vmatprep.mubr.f32.mxu0 0.0
    %1731 = vmatmul.mubr.f32.gmra.mrb[0].mxu0 %v827
    %v1732 = vpop.f32.mrb[0].mxu0
    %v1733 = vadd.f32 0.0, %v1732
    %v1734 = vpop.f32.mrb[0].mxu0
    %1735 = vmatprep.mubr.f32.mxu0 0.0
    %1736 = vmatmul.mubr.f32.gmra.mrb[0].mxu0 %v830
    %v1737 = vpop.f32.mrb[0].mxu0
    %v1738 = vadd.f32 0.0, %v1737
    %v1739 = vpop.f32.mrb[0].mxu0
    %1740 = vmatprep.mubr.f32.mxu0 0.0
    %1741 = vmatmul.mubr.f32.gmra.mrb[0].mxu0 %v833
    %v1742 = vpop.f32.mrb[0].mxu0
    %v1743 = vadd.f32 0.0, %v1742
    %v1744 = vpop.f32.mrb[0].mxu0
    %1745 = vmatprep.mubr.f32.mxu0 0.0
    %1746 = vmatmul.mubr.f32.gmra.mrb[0].mxu0 %v836
    %v1747 = vpop.f32.mrb[0].mxu0
    %v1748 = vadd.f32 0.0, %v1747
    %v1749 = vpop.f32.mrb[0].mxu0
    %1750 = vmatprep.mubr.f32.mxu0 0.0
    %1751 = vmatmul.mubr.f32.gmra.mrb[0].mxu0 %v839
    %v1752 = vpop.f32.mrb[0].mxu0
    %v1753 = vadd.f32 0.0, %v1752
    %v1754 = vpop.f32.mrb[0].mxu0
    %1755 = vmatprep.mubr.f32.mxu0 0.0
    %1756 = vmatmul.mubr.f32.gmra.mrb[0].mxu0 %v842
    %v1757 = vpop.f32.mrb[0].mxu0
    %v1758 = vadd.f32 0.0, %v1757
    %v1759 = vpop.f32.mrb[0].mxu0
    %1760 = vmatprep.mubr.f32.mxu0 0.0
    %1761 = vmatmul.mubr.f32.gmra.mrb[0].mxu0 %v845
    %v1762 = vpop.f32.mrb[0].mxu0
    %v1763 = vadd.f32 0.0, %v1762
    %v1764 = vpop.f32.mrb[0].mxu0
    %1765 = vmatprep.mubr.f32.mxu0 0.0
    %1766 = vmatmul.mubr.f32.gmra.mrb[0].mxu0 %v848
    %v1767 = vpop.f32.mrb[0].mxu0
    %v1768 = vadd.f32 0.0, %v1767
    %v1769 = vpop.f32.mrb[0].mxu0
    %1770 = vmatprep.mubr.f32.mxu0 0.0
    %1771 = vmatmul.mubr.f32.gmra.mrb[0].mxu0 %v851
    %v1772 = vpop.f32.mrb[0].mxu0
    %v1773 = vpop.f32.mrb[0].mxu0
    %1774 = vmatprep.mubr.f32.mxu0 0.0
    %1775 = vmatmul.mubr.f32.gmra.mrb[0].mxu0 %v854
    %v1776 = vpop.f32.mrb[0].mxu0
    %v1777 = vpop.f32.mrb[0].mxu0
    %1778 = vmatprep.mubr.f32.mxu0 0.0
    %1779 = vmatmul.mubr.f32.gmra.mrb[0].mxu0 %v857
    %v1780 = vpop.f32.mrb[0].mxu0
    %v1781 = vpop.f32.mrb[0].mxu0
    %1782 = vmatprep.mubr.f32.mxu0 0.0
    %1783 = vmatmul.mubr.f32.gmra.mrb[0].mxu0 %v860
    %v1784 = vpop.f32.mrb[0].mxu0
    %v1785 = vpop.f32.mrb[0].mxu0
    %1786 = vdwg.mxu0
    %v1787 = vadd.f32 %v1654, %v1733
    %v1788 = vadd.f32 %v1655, %v1738
    %v1789 = vadd.f32 %v1656, %v1743
    %v1790 = vadd.f32 %v1657, %v1748
    %v1791 = vadd.f32 %v1658, %v1753
    %v1792 = vadd.f32 %v1659, %v1758
    %v1793 = vadd.f32 %v1660, %v1763
    %v1794 = vadd.f32 %v1661, %v1768
    %v1795 = vxor.u32 %v1787, 2147483648
    %v1796 = vxor.u32 %v1788, 2147483648
    %v1797 = vxor.u32 %v1789, 2147483648
    %v1798 = vxor.u32 %v1790, 2147483648
    %v1799 = vxor.u32 %v1791, 2147483648
    %v1800 = vxor.u32 %v1792, 2147483648
    %v1801 = vxor.u32 %v1793, 2147483648
    %v1802 = vxor.u32 %v1794, 2147483648
    %v1803 = vmul.f32 %v1795, 1.442695
    %v1804 = vpow.pop %v1803
    %v1805 = vmul.f32 %v1796, 1.442695
    %v1806 = vpow.pop %v1805
    %v1807 = vmul.f32 %v1797, 1.442695
    %v1808 = vpow.pop %v1807
    %v1809 = vmul.f32 %v1798, 1.442695
    %v1810 = vpow.pop %v1809
    %v1811 = vmul.f32 %v1799, 1.442695
    %v1812 = vpow.pop %v1811
    %v1813 = vmul.f32 %v1800, 1.442695
    %v1814 = vpow.pop %v1813
    %v1815 = vmul.f32 %v1801, 1.442695
    %v1816 = vpow.pop %v1815
    %v1817 = vmul.f32 %v1802, 1.442695
    %v1818 = vpow.pop %v1817
    %v1819 = vadd.f32 %v1804, 1.0
    %v1820 = vadd.f32 %v1806, 1.0
    %v1821 = vadd.f32 %v1808, 1.0
    %v1822 = vadd.f32 %v1810, 1.0
    %v1823 = vadd.f32 %v1812, 1.0
    %v1824 = vadd.f32 %v1814, 1.0
    %v1825 = vadd.f32 %v1816, 1.0
    %v1826 = vadd.f32 %v1818, 1.0
    %v1827 = vrcp.pop %v1819
    %v1828 = vmul.f32 1.0, %v1827
    %v1829 = vrcp.pop %v1820
    %v1830 = vmul.f32 1.0, %v1829
    %v1831 = vrcp.pop %v1821
    %v1832 = vmul.f32 1.0, %v1831
    %v1833 = vrcp.pop %v1822
    %v1834 = vmul.f32 1.0, %v1833
    %v1835 = vrcp.pop %v1823
    %v1836 = vmul.f32 1.0, %v1835
    %v1837 = vrcp.pop %v1824
    %v1838 = vmul.f32 1.0, %v1837
    %v1839 = vrcp.pop %v1825
    %v1840 = vmul.f32 1.0, %v1839
    %v1841 = vrcp.pop %v1826
    %v1842 = vmul.f32 1.0, %v1841
    %v1843 = vmul.f32 %v1662, %v1836
    %v1844 = vmul.f32 %v1663, %v1838
    %v1845 = vmul.f32 %v1664, %v1840
    %v1846 = vmul.f32 %v1665, %v1842
    %v1847 = vmul.f32 %v1650, %v1828
    %v1848 = vmul.f32 %v1651, %v1830
    %v1849 = vmul.f32 %v1652, %v1832
    %v1850 = vmul.f32 %v1653, %v1834
    %v1851 = vadd.f32 %v1843, %v1847
    %v1852 = vadd.f32 %v1844, %v1848
    %v1853 = vadd.f32 %v1845, %v1849
    %v1854 = vadd.f32 %v1846, %v1850
    %v1855 = vld [vmem:[%s655] sm:$0xff]
    %v1856 = vld [vmem:[%s655 + $0x8] sm:$0xff]
    %v1857 = vld [vmem:[%s655 + $0x10] sm:$0xff]
    %v1858 = vld [vmem:[%s655 + $0x18] sm:$0xff]
    %v1859 = vld [vmem:[%s655 + $0x20] sm:$0xff]
    %v1860 = vld [vmem:[%s655 + $0x28] sm:$0xff]
    %v1861 = vld [vmem:[%s655 + $0x30] sm:$0xff]
    %v1862 = vld [vmem:[%s655 + $0x38] sm:$0xff]
    %v1863 = vld [vmem:[%s655 + $0x60] sm:$0xff]
    %v1864 = vld [vmem:[%s655 + $0x68] sm:$0xff]
    %v1865 = vld [vmem:[%s655 + $0x70] sm:$0xff]
    %v1866 = vld [vmem:[%s655 + $0x78] sm:$0xff]
    %1867 = vmatprep.subr.mxu0 0.0
    %1868 = vmatpush1.msra.mxu0 %v1851
    %1869 = vmatprep.subr.mxu0 0.0
    %1870 = vmatpush1.msra.mxu0 %v1852
    %1871 = vmatprep.subr.mxu0 0.0
    %1872 = vmatpush1.msra.mxu0 %v1853
    %1873 = vmatprep.subr.mxu0 0.0
    %1874 = vmatpush1.msra.mxu0 %v1854
    %1875 = vmatprep.subr.mxu0 0.0
    %1876 = vmatpush1.msra.mxu0 0.0
    %1877 = vmatprep.subr.mxu0 0.0
    %1878 = vmatpush1.msra.mxu0 0.0
    %1879 = vmatprep.subr.mxu0 0.0
    %1880 = vmatpush1.msra.mxu0 0.0
    %1881 = vmatprep.subr.mxu0 0.0
    %1882 = vmatpush1.msra.mxu0 0.0
    %1883 = vmatprep.subr.mxu0 0.0
    %1884 = vmatpush1.msra.mxu0 0.0
    %1885 = vmatprep.subr.mxu0 0.0
    %1886 = vmatpush1.msra.mxu0 0.0
    %1887 = vmatprep.subr.mxu0 0.0
    %1888 = vmatpush1.msra.mxu0 0.0
    %1889 = vmatprep.subr.mxu0 0.0
    %1890 = vmatpush1.msra.mxu0 0.0
    %1891 = vmatprep.subr.mxu0 0.0
    %1892 = vmatpush1.msra.mxu0 0.0
    %1893 = vmatprep.subr.mxu0 0.0
    %1894 = vmatpush1.msra.mxu0 0.0
    %1895 = vmatprep.subr.mxu0 0.0
    %1896 = vmatpush1.msra.mxu0 0.0
    %1897 = vmatprep.subr.mxu0 0.0
    %1898 = vmatpush1.msra.mxu0 0.0
    %1899 = vmatprep.subr.mxu0 0.0
    %1900 = vmatpush1.msra.mxu0 0.0
    %1901 = vmatprep.subr.mxu0 0.0
    %1902 = vmatpush1.msra.mxu0 0.0
    %1903 = vmatprep.subr.mxu0 0.0
    %1904 = vmatpush1.msra.mxu0 0.0
    %1905 = vmatprep.subr.mxu0 0.0
    %1906 = vmatpush1.msra.mxu0 0.0
    %1907 = vmatprep.subr.mxu0 0.0
    %1908 = vmatpush1.msra.mxu0 0.0
    %1909 = vmatprep.subr.mxu0 0.0
    %1910 = vmatpush1.msra.mxu0 0.0
    %1911 = vmatprep.subr.mxu0 0.0
    %1912 = vmatpush1.msra.mxu0 0.0
    %1913 = vmatprep.subr.mxu0 0.0
    %1914 = vmatpush1.msra.mxu0 0.0
    %1915 = vmatprep.subr.mxu0 0.0
    %1916 = vmatpush1.msra.mxu0 0.0
    %1917 = vmatprep.subr.mxu0 0.0
    %1918 = vmatpush1.msra.mxu0 0.0
    %1919 = vmatprep.subr.mxu0 0.0
    %1920 = vmatpush1.msra.mxu0 0.0
    %1921 = vmatprep.subr.mxu0 0.0
    %1922 = vmatpush1.msra.mxu0 0.0
    %1923 = vmatprep.subr.mxu0 0.0
    %1924 = vmatpush1.msra.mxu0 0.0
    %1925 = vmatprep.subr.mxu0 0.0
    %1926 = vmatpush1.msra.mxu0 0.0
    %1927 = vmatprep.subr.mxu0 0.0
    %1928 = vmatpush1.msra.mxu0 0.0
    %1929 = vmatprep.subr.mxu0 0.0
    %1930 = vmatpush1.msra.mxu0 0.0
    %1931 = vmatprep.mubr.f32.mxu0 0.0
    %1932 = vmatmul.mubr.f32.gmra.mrb[0].mxu0 %v827
    %v1933 = vpop.f32.mrb[0].mxu0
    %v1934 = vadd.f32 0.0, %v1933
    %v1935 = vpop.f32.mrb[0].mxu0
    %1936 = vmatprep.mubr.f32.mxu0 0.0
    %1937 = vmatmul.mubr.f32.gmra.mrb[0].mxu0 %v830
    %v1938 = vpop.f32.mrb[0].mxu0
    %v1939 = vadd.f32 0.0, %v1938
    %v1940 = vpop.f32.mrb[0].mxu0
    %1941 = vmatprep.mubr.f32.mxu0 0.0
    %1942 = vmatmul.mubr.f32.gmra.mrb[0].mxu0 %v833
    %v1943 = vpop.f32.mrb[0].mxu0
    %v1944 = vadd.f32 0.0, %v1943
    %v1945 = vpop.f32.mrb[0].mxu0
    %1946 = vmatprep.mubr.f32.mxu0 0.0
    %1947 = vmatmul.mubr.f32.gmra.mrb[0].mxu0 %v836
    %v1948 = vpop.f32.mrb[0].mxu0
    %v1949 = vadd.f32 0.0, %v1948
    %v1950 = vpop.f32.mrb[0].mxu0
    %1951 = vmatprep.mubr.f32.mxu0 0.0
    %1952 = vmatmul.mubr.f32.gmra.mrb[0].mxu0 %v839
    %v1953 = vpop.f32.mrb[0].mxu0
    %v1954 = vadd.f32 0.0, %v1953
    %v1955 = vpop.f32.mrb[0].mxu0
    %1956 = vmatprep.mubr.f32.mxu0 0.0
    %1957 = vmatmul.mubr.f32.gmra.mrb[0].mxu0 %v842
    %v1958 = vpop.f32.mrb[0].mxu0
    %v1959 = vadd.f32 0.0, %v1958
    %v1960 = vpop.f32.mrb[0].mxu0
    %1961 = vmatprep.mubr.f32.mxu0 0.0
    %1962 = vmatmul.mubr.f32.gmra.mrb[0].mxu0 %v845
    %v1963 = vpop.f32.mrb[0].mxu0
    %v1964 = vadd.f32 0.0, %v1963
    %v1965 = vpop.f32.mrb[0].mxu0
    %1966 = vmatprep.mubr.f32.mxu0 0.0
    %1967 = vmatmul.mubr.f32.gmra.mrb[0].mxu0 %v848
    %v1968 = vpop.f32.mrb[0].mxu0
    %v1969 = vadd.f32 0.0, %v1968
    %v1970 = vpop.f32.mrb[0].mxu0
    %1971 = vmatprep.mubr.f32.mxu0 0.0
    %1972 = vmatmul.mubr.f32.gmra.mrb[0].mxu0 %v851
    %v1973 = vpop.f32.mrb[0].mxu0
    %v1974 = vpop.f32.mrb[0].mxu0
    %1975 = vmatprep.mubr.f32.mxu0 0.0
    %1976 = vmatmul.mubr.f32.gmra.mrb[0].mxu0 %v854
    %v1977 = vpop.f32.mrb[0].mxu0
    %v1978 = vpop.f32.mrb[0].mxu0
    %1979 = vmatprep.mubr.f32.mxu0 0.0
    %1980 = vmatmul.mubr.f32.gmra.mrb[0].mxu0 %v857
    %v1981 = vpop.f32.mrb[0].mxu0
    %v1982 = vpop.f32.mrb[0].mxu0
    %1983 = vmatprep.mubr.f32.mxu0 0.0
    %1984 = vmatmul.mubr.f32.gmra.mrb[0].mxu0 %v860
    %v1985 = vpop.f32.mrb[0].mxu0
    %v1986 = vpop.f32.mrb[0].mxu0
    %1987 = vdwg.mxu0
    %v1988 = vadd.f32 %v1855, %v1934
    %v1989 = vadd.f32 %v1856, %v1939
    %v1990 = vadd.f32 %v1857, %v1944
    %v1991 = vadd.f32 %v1858, %v1949
    %v1992 = vadd.f32 %v1859, %v1954
    %v1993 = vadd.f32 %v1860, %v1959
    %v1994 = vadd.f32 %v1861, %v1964
    %v1995 = vadd.f32 %v1862, %v1969
    %v1996 = vxor.u32 %v1988, 2147483648
    %v1997 = vxor.u32 %v1989, 2147483648
    %v1998 = vxor.u32 %v1990, 2147483648
    %v1999 = vxor.u32 %v1991, 2147483648
    %v2000 = vxor.u32 %v1992, 2147483648
    %v2001 = vxor.u32 %v1993, 2147483648
    %v2002 = vxor.u32 %v1994, 2147483648
    %v2003 = vxor.u32 %v1995, 2147483648
    %v2004 = vmul.f32 %v1996, 1.442695
    %v2005 = vpow.pop %v2004
    %v2006 = vmul.f32 %v1997, 1.442695
    %v2007 = vpow.pop %v2006
    %v2008 = vmul.f32 %v1998, 1.442695
    %v2009 = vpow.pop %v2008
    %v2010 = vmul.f32 %v1999, 1.442695
    %v2011 = vpow.pop %v2010
    %v2012 = vmul.f32 %v2000, 1.442695
    %v2013 = vpow.pop %v2012
    %v2014 = vmul.f32 %v2001, 1.442695
    %v2015 = vpow.pop %v2014
    %v2016 = vmul.f32 %v2002, 1.442695
    %v2017 = vpow.pop %v2016
    %v2018 = vmul.f32 %v2003, 1.442695
    %v2019 = vpow.pop %v2018
    %v2020 = vadd.f32 %v2005, 1.0
    %v2021 = vadd.f32 %v2007, 1.0
    %v2022 = vadd.f32 %v2009, 1.0
    %v2023 = vadd.f32 %v2011, 1.0
    %v2024 = vadd.f32 %v2013, 1.0
    %v2025 = vadd.f32 %v2015, 1.0
    %v2026 = vadd.f32 %v2017, 1.0
    %v2027 = vadd.f32 %v2019, 1.0
    %v2028 = vrcp.pop %v2020
    %v2029 = vmul.f32 1.0, %v2028
    %v2030 = vrcp.pop %v2021
    %v2031 = vmul.f32 1.0, %v2030
    %v2032 = vrcp.pop %v2022
    %v2033 = vmul.f32 1.0, %v2032
    %v2034 = vrcp.pop %v2023
    %v2035 = vmul.f32 1.0, %v2034
    %v2036 = vrcp.pop %v2024
    %v2037 = vmul.f32 1.0, %v2036
    %v2038 = vrcp.pop %v2025
    %v2039 = vmul.f32 1.0, %v2038
    %v2040 = vrcp.pop %v2026
    %v2041 = vmul.f32 1.0, %v2040
    %v2042 = vrcp.pop %v2027
    %v2043 = vmul.f32 1.0, %v2042
    %v2044 = vmul.f32 %v1863, %v2037
    %v2045 = vmul.f32 %v1864, %v2039
    %v2046 = vmul.f32 %v1865, %v2041
    %v2047 = vmul.f32 %v1866, %v2043
    %v2048 = vmul.f32 %v1851, %v2029
    %v2049 = vmul.f32 %v1852, %v2031
    %v2050 = vmul.f32 %v1853, %v2033
    %v2051 = vmul.f32 %v1854, %v2035
    %v2052 = vadd.f32 %v2044, %v2048
    %v2053 = vadd.f32 %v2045, %v2049
    %v2054 = vadd.f32 %v2046, %v2050
    %v2055 = vadd.f32 %v2047, %v2051
    %v2056 = vld [vmem:[%s720] sm:$0xff]
    %v2057 = vld [vmem:[%s720 + $0x8] sm:$0xff]
    %v2058 = vld [vmem:[%s720 + $0x10] sm:$0xff]
    %v2059 = vld [vmem:[%s720 + $0x18] sm:$0xff]
    %v2060 = vld [vmem:[%s720 + $0x20] sm:$0xff]
    %v2061 = vld [vmem:[%s720 + $0x28] sm:$0xff]
    %v2062 = vld [vmem:[%s720 + $0x30] sm:$0xff]
    %v2063 = vld [vmem:[%s720 + $0x38] sm:$0xff]
    %v2064 = vld [vmem:[%s720 + $0x60] sm:$0xff]
    %v2065 = vld [vmem:[%s720 + $0x68] sm:$0xff]
    %v2066 = vld [vmem:[%s720 + $0x70] sm:$0xff]
    %v2067 = vld [vmem:[%s720 + $0x78] sm:$0xff]
    %2068 = vmatprep.subr.mxu0 0.0
    %2069 = vmatpush1.msra.mxu0 %v2052
    %2070 = vmatprep.subr.mxu0 0.0
    %2071 = vmatpush1.msra.mxu0 %v2053
    %2072 = vmatprep.subr.mxu0 0.0
    %2073 = vmatpush1.msra.mxu0 %v2054
    %2074 = vmatprep.subr.mxu0 0.0
    %2075 = vmatpush1.msra.mxu0 %v2055
    %2076 = vmatprep.subr.mxu0 0.0
    %2077 = vmatpush1.msra.mxu0 0.0
    %2078 = vmatprep.subr.mxu0 0.0
    %2079 = vmatpush1.msra.mxu0 0.0
    %2080 = vmatprep.subr.mxu0 0.0
    %2081 = vmatpush1.msra.mxu0 0.0
    %2082 = vmatprep.subr.mxu0 0.0
    %2083 = vmatpush1.msra.mxu0 0.0
    %2084 = vmatprep.subr.mxu0 0.0
    %2085 = vmatpush1.msra.mxu0 0.0
    %2086 = vmatprep.subr.mxu0 0.0
    %2087 = vmatpush1.msra.mxu0 0.0
    %2088 = vmatprep.subr.mxu0 0.0
    %2089 = vmatpush1.msra.mxu0 0.0
    %2090 = vmatprep.subr.mxu0 0.0
    %2091 = vmatpush1.msra.mxu0 0.0
    %2092 = vmatprep.subr.mxu0 0.0
    %2093 = vmatpush1.msra.mxu0 0.0
    %2094 = vmatprep.subr.mxu0 0.0
    %2095 = vmatpush1.msra.mxu0 0.0
    %2096 = vmatprep.subr.mxu0 0.0
    %2097 = vmatpush1.msra.mxu0 0.0
    %2098 = vmatprep.subr.mxu0 0.0
    %2099 = vmatpush1.msra.mxu0 0.0
    %2100 = vmatprep.subr.mxu0 0.0
    %2101 = vmatpush1.msra.mxu0 0.0
    %2102 = vmatprep.subr.mxu0 0.0
    %2103 = vmatpush1.msra.mxu0 0.0
    %2104 = vmatprep.subr.mxu0 0.0
    %2105 = vmatpush1.msra.mxu0 0.0
    %2106 = vmatprep.subr.mxu0 0.0
    %2107 = vmatpush1.msra.mxu0 0.0
    %2108 = vmatprep.subr.mxu0 0.0
    %2109 = vmatpush1.msra.mxu0 0.0
    %2110 = vmatprep.subr.mxu0 0.0
    %2111 = vmatpush1.msra.mxu0 0.0
    %2112 = vmatprep.subr.mxu0 0.0
    %2113 = vmatpush1.msra.mxu0 0.0
    %2114 = vmatprep.subr.mxu0 0.0
    %2115 = vmatpush1.msra.mxu0 0.0
    %2116 = vmatprep.subr.mxu0 0.0
    %2117 = vmatpush1.msra.mxu0 0.0
    %2118 = vmatprep.subr.mxu0 0.0
    %2119 = vmatpush1.msra.mxu0 0.0
    %2120 = vmatprep.subr.mxu0 0.0
    %2121 = vmatpush1.msra.mxu0 0.0
    %2122 = vmatprep.subr.mxu0 0.0
    %2123 = vmatpush1.msra.mxu0 0.0
    %2124 = vmatprep.subr.mxu0 0.0
    %2125 = vmatpush1.msra.mxu0 0.0
    %2126 = vmatprep.subr.mxu0 0.0
    %2127 = vmatpush1.msra.mxu0 0.0
    %2128 = vmatprep.subr.mxu0 0.0
    %2129 = vmatpush1.msra.mxu0 0.0
    %2130 = vmatprep.subr.mxu0 0.0
    %2131 = vmatpush1.msra.mxu0 0.0
    %2132 = vmatprep.mubr.f32.mxu0 0.0
    %2133 = vmatmul.mubr.f32.gmra.mrb[0].mxu0 %v827
    %v2134 = vpop.f32.mrb[0].mxu0
    %v2135 = vadd.f32 0.0, %v2134
    %v2136 = vpop.f32.mrb[0].mxu0
    %2137 = vmatprep.mubr.f32.mxu0 0.0
    %2138 = vmatmul.mubr.f32.gmra.mrb[0].mxu0 %v830
    %v2139 = vpop.f32.mrb[0].mxu0
    %v2140 = vadd.f32 0.0, %v2139
    %v2141 = vpop.f32.mrb[0].mxu0
    %2142 = vmatprep.mubr.f32.mxu0 0.0
    %2143 = vmatmul.mubr.f32.gmra.mrb[0].mxu0 %v833
    %v2144 = vpop.f32.mrb[0].mxu0
    %v2145 = vadd.f32 0.0, %v2144
    %v2146 = vpop.f32.mrb[0].mxu0
    %2147 = vmatprep.mubr.f32.mxu0 0.0
    %2148 = vmatmul.mubr.f32.gmra.mrb[0].mxu0 %v836
    %v2149 = vpop.f32.mrb[0].mxu0
    %v2150 = vadd.f32 0.0, %v2149
    %v2151 = vpop.f32.mrb[0].mxu0
    %2152 = vmatprep.mubr.f32.mxu0 0.0
    %2153 = vmatmul.mubr.f32.gmra.mrb[0].mxu0 %v839
    %v2154 = vpop.f32.mrb[0].mxu0
    %v2155 = vadd.f32 0.0, %v2154
    %v2156 = vpop.f32.mrb[0].mxu0
    %2157 = vmatprep.mubr.f32.mxu0 0.0
    %2158 = vmatmul.mubr.f32.gmra.mrb[0].mxu0 %v842
    %v2159 = vpop.f32.mrb[0].mxu0
    %v2160 = vadd.f32 0.0, %v2159
    %v2161 = vpop.f32.mrb[0].mxu0
    %2162 = vmatprep.mubr.f32.mxu0 0.0
    %2163 = vmatmul.mubr.f32.gmra.mrb[0].mxu0 %v845
    %v2164 = vpop.f32.mrb[0].mxu0
    %v2165 = vadd.f32 0.0, %v2164
    %v2166 = vpop.f32.mrb[0].mxu0
    %2167 = vmatprep.mubr.f32.mxu0 0.0
    %2168 = vmatmul.mubr.f32.gmra.mrb[0].mxu0 %v848
    %v2169 = vpop.f32.mrb[0].mxu0
    %v2170 = vadd.f32 0.0, %v2169
    %v2171 = vpop.f32.mrb[0].mxu0
    %2172 = vmatprep.mubr.f32.mxu0 0.0
    %2173 = vmatmul.mubr.f32.gmra.mrb[0].mxu0 %v851
    %v2174 = vpop.f32.mrb[0].mxu0
    %v2175 = vpop.f32.mrb[0].mxu0
    %2176 = vmatprep.mubr.f32.mxu0 0.0
    %2177 = vmatmul.mubr.f32.gmra.mrb[0].mxu0 %v854
    %v2178 = vpop.f32.mrb[0].mxu0
    %v2179 = vpop.f32.mrb[0].mxu0
    %2180 = vmatprep.mubr.f32.mxu0 0.0
    %2181 = vmatmul.mubr.f32.gmra.mrb[0].mxu0 %v857
    %v2182 = vpop.f32.mrb[0].mxu0
    %v2183 = vpop.f32.mrb[0].mxu0
    %2184 = vmatprep.mubr.f32.mxu0 0.0
    %2185 = vmatmul.mubr.f32.gmra.mrb[0].mxu0 %v860
    %v2186 = vpop.f32.mrb[0].mxu0
    %v2187 = vpop.f32.mrb[0].mxu0
    %2188 = vdwg.mxu0
    %v2189 = vadd.f32 %v2056, %v2135
    %v2190 = vadd.f32 %v2057, %v2140
    %v2191 = vadd.f32 %v2058, %v2145
    %v2192 = vadd.f32 %v2059, %v2150
    %v2193 = vadd.f32 %v2060, %v2155
    %v2194 = vadd.f32 %v2061, %v2160
    %v2195 = vadd.f32 %v2062, %v2165
    %v2196 = vadd.f32 %v2063, %v2170
    %v2197 = vxor.u32 %v2189, 2147483648
    %v2198 = vxor.u32 %v2190, 2147483648
    %v2199 = vxor.u32 %v2191, 2147483648
    %v2200 = vxor.u32 %v2192, 2147483648
    %v2201 = vxor.u32 %v2193, 2147483648
    %v2202 = vxor.u32 %v2194, 2147483648
    %v2203 = vxor.u32 %v2195, 2147483648
    %v2204 = vxor.u32 %v2196, 2147483648
    %v2205 = vmul.f32 %v2197, 1.442695
    %v2206 = vpow.pop %v2205
    %v2207 = vmul.f32 %v2198, 1.442695
    %v2208 = vpow.pop %v2207
    %v2209 = vmul.f32 %v2199, 1.442695
    %v2210 = vpow.pop %v2209
    %v2211 = vmul.f32 %v2200, 1.442695
    %v2212 = vpow.pop %v2211
    %v2213 = vmul.f32 %v2201, 1.442695
    %v2214 = vpow.pop %v2213
    %v2215 = vmul.f32 %v2202, 1.442695
    %v2216 = vpow.pop %v2215
    %v2217 = vmul.f32 %v2203, 1.442695
    %v2218 = vpow.pop %v2217
    %v2219 = vmul.f32 %v2204, 1.442695
    %v2220 = vpow.pop %v2219
    %v2221 = vadd.f32 %v2206, 1.0
    %v2222 = vadd.f32 %v2208, 1.0
    %v2223 = vadd.f32 %v2210, 1.0
    %v2224 = vadd.f32 %v2212, 1.0
    %v2225 = vadd.f32 %v2214, 1.0
    %v2226 = vadd.f32 %v2216, 1.0
    %v2227 = vadd.f32 %v2218, 1.0
    %v2228 = vadd.f32 %v2220, 1.0
    %v2229 = vrcp.pop %v2221
    %v2230 = vmul.f32 1.0, %v2229
    %v2231 = vrcp.pop %v2222
    %v2232 = vmul.f32 1.0, %v2231
    %v2233 = vrcp.pop %v2223
    %v2234 = vmul.f32 1.0, %v2233
    %v2235 = vrcp.pop %v2224
    %v2236 = vmul.f32 1.0, %v2235
    %v2237 = vrcp.pop %v2225
    %v2238 = vmul.f32 1.0, %v2237
    %v2239 = vrcp.pop %v2226
    %v2240 = vmul.f32 1.0, %v2239
    %v2241 = vrcp.pop %v2227
    %v2242 = vmul.f32 1.0, %v2241
    %v2243 = vrcp.pop %v2228
    %v2244 = vmul.f32 1.0, %v2243
    %v2245 = vmul.f32 %v2064, %v2238
    %v2246 = vmul.f32 %v2065, %v2240
    %v2247 = vmul.f32 %v2066, %v2242
    %v2248 = vmul.f32 %v2067, %v2244
    %v2249 = vmul.f32 %v2052, %v2230
    %v2250 = vmul.f32 %v2053, %v2232
    %v2251 = vmul.f32 %v2054, %v2234
    %v2252 = vmul.f32 %v2055, %v2236
    %v2253 = vadd.f32 %v2245, %v2249
    %v2254 = vadd.f32 %v2246, %v2250
    %v2255 = vadd.f32 %v2247, %v2251
    %v2256 = vadd.f32 %v2248, %v2252
    %v2257 = vld [vmem:[%s785] sm:$0xff]
    %v2258 = vld [vmem:[%s785 + $0x8] sm:$0xff]
    %v2259 = vld [vmem:[%s785 + $0x10] sm:$0xff]
    %v2260 = vld [vmem:[%s785 + $0x18] sm:$0xff]
    %v2261 = vld [vmem:[%s785 + $0x20] sm:$0xff]
    %v2262 = vld [vmem:[%s785 + $0x28] sm:$0xff]
    %v2263 = vld [vmem:[%s785 + $0x30] sm:$0xff]
    %v2264 = vld [vmem:[%s785 + $0x38] sm:$0xff]
    %v2265 = vld [vmem:[%s785 + $0x40] sm:$0xff]
    %v2266 = vld [vmem:[%s785 + $0x48] sm:$0xff]
    %v2267 = vld [vmem:[%s785 + $0x50] sm:$0xff]
    %v2268 = vld [vmem:[%s785 + $0x58] sm:$0xff]
    %v2269 = vld [vmem:[%s785 + $0x60] sm:$0xff]
    %v2270 = vld [vmem:[%s785 + $0x68] sm:$0xff]
    %v2271 = vld [vmem:[%s785 + $0x70] sm:$0xff]
    %v2272 = vld [vmem:[%s785 + $0x78] sm:$0xff]
    %2273 = vmatprep.subr.mxu0 0.0
    %2274 = vmatpush1.msra.mxu0 %v2253
    %2275 = vmatprep.subr.mxu0 0.0
    %2276 = vmatpush1.msra.mxu0 %v2254
    %2277 = vmatprep.subr.mxu0 0.0
    %2278 = vmatpush1.msra.mxu0 %v2255
    %2279 = vmatprep.subr.mxu0 0.0
    %2280 = vmatpush1.msra.mxu0 %v2256
    %2281 = vmatprep.subr.mxu0 0.0
    %2282 = vmatpush1.msra.mxu0 0.0
    %2283 = vmatprep.subr.mxu0 0.0
    %2284 = vmatpush1.msra.mxu0 0.0
    %2285 = vmatprep.subr.mxu0 0.0
    %2286 = vmatpush1.msra.mxu0 0.0
    %2287 = vmatprep.subr.mxu0 0.0
    %2288 = vmatpush1.msra.mxu0 0.0
    %2289 = vmatprep.subr.mxu0 0.0
    %2290 = vmatpush1.msra.mxu0 0.0
    %2291 = vmatprep.subr.mxu0 0.0
    %2292 = vmatpush1.msra.mxu0 0.0
    %2293 = vmatprep.subr.mxu0 0.0
    %2294 = vmatpush1.msra.mxu0 0.0
    %2295 = vmatprep.subr.mxu0 0.0
    %2296 = vmatpush1.msra.mxu0 0.0
    %2297 = vmatprep.subr.mxu0 0.0
    %2298 = vmatpush1.msra.mxu0 0.0
    %2299 = vmatprep.subr.mxu0 0.0
    %2300 = vmatpush1.msra.mxu0 0.0
    %2301 = vmatprep.subr.mxu0 0.0
    %2302 = vmatpush1.msra.mxu0 0.0
    %2303 = vmatprep.subr.mxu0 0.0
    %2304 = vmatpush1.msra.mxu0 0.0
    %2305 = vmatprep.subr.mxu0 0.0
    %2306 = vmatpush1.msra.mxu0 0.0
    %2307 = vmatprep.subr.mxu0 0.0
    %2308 = vmatpush1.msra.mxu0 0.0
    %2309 = vmatprep.subr.mxu0 0.0
    %2310 = vmatpush1.msra.mxu0 0.0
    %2311 = vmatprep.subr.mxu0 0.0
    %2312 = vmatpush1.msra.mxu0 0.0
    %2313 = vmatprep.subr.mxu0 0.0
    %2314 = vmatpush1.msra.mxu0 0.0
    %2315 = vmatprep.subr.mxu0 0.0
    %2316 = vmatpush1.msra.mxu0 0.0
    %2317 = vmatprep.subr.mxu0 0.0
    %2318 = vmatpush1.msra.mxu0 0.0
    %2319 = vmatprep.subr.mxu0 0.0
    %2320 = vmatpush1.msra.mxu0 0.0
    %2321 = vmatprep.subr.mxu0 0.0
    %2322 = vmatpush1.msra.mxu0 0.0
    %2323 = vmatprep.subr.mxu0 0.0
    %2324 = vmatpush1.msra.mxu0 0.0
    %2325 = vmatprep.subr.mxu0 0.0
    %2326 = vmatpush1.msra.mxu0 0.0
    %2327 = vmatprep.subr.mxu0 0.0
    %2328 = vmatpush1.msra.mxu0 0.0
    %2329 = vmatprep.subr.mxu0 0.0
    %2330 = vmatpush1.msra.mxu0 0.0
    %2331 = vmatprep.subr.mxu0 0.0
    %2332 = vmatpush1.msra.mxu0 0.0
    %2333 = vmatprep.subr.mxu0 0.0
    %2334 = vmatpush1.msra.mxu0 0.0
    %2335 = vmatprep.subr.mxu0 0.0
    %2336 = vmatpush1.msra.mxu0 0.0
    %2337 = vmatprep.mubr.f32.mxu0 0.0
    %2338 = vmatmul.mubr.f32.gmra.mrb[0].mxu0 %v827
    %v2339 = vpop.f32.mrb[0].mxu0
    %v2340 = vadd.f32 0.0, %v2339
    %v2341 = vpop.f32.mrb[0].mxu0
    %2342 = vmatprep.mubr.f32.mxu0 0.0
    %2343 = vmatmul.mubr.f32.gmra.mrb[0].mxu0 %v830
    %v2344 = vpop.f32.mrb[0].mxu0
    %v2345 = vadd.f32 0.0, %v2344
    %v2346 = vpop.f32.mrb[0].mxu0
    %2347 = vmatprep.mubr.f32.mxu0 0.0
    %2348 = vmatmul.mubr.f32.gmra.mrb[0].mxu0 %v833
    %v2349 = vpop.f32.mrb[0].mxu0
    %v2350 = vadd.f32 0.0, %v2349
    %v2351 = vpop.f32.mrb[0].mxu0
    %2352 = vmatprep.mubr.f32.mxu0 0.0
    %2353 = vmatmul.mubr.f32.gmra.mrb[0].mxu0 %v836
    %v2354 = vpop.f32.mrb[0].mxu0
    %v2355 = vadd.f32 0.0, %v2354
    %v2356 = vpop.f32.mrb[0].mxu0
    %2357 = vmatprep.mubr.f32.mxu0 0.0
    %2358 = vmatmul.mubr.f32.gmra.mrb[0].mxu0 %v839
    %v2359 = vpop.f32.mrb[0].mxu0
    %v2360 = vadd.f32 0.0, %v2359
    %v2361 = vpop.f32.mrb[0].mxu0
    %2362 = vmatprep.mubr.f32.mxu0 0.0
    %2363 = vmatmul.mubr.f32.gmra.mrb[0].mxu0 %v842
    %v2364 = vpop.f32.mrb[0].mxu0
    %v2365 = vadd.f32 0.0, %v2364
    %v2366 = vpop.f32.mrb[0].mxu0
    %2367 = vmatprep.mubr.f32.mxu0 0.0
    %2368 = vmatmul.mubr.f32.gmra.mrb[0].mxu0 %v845
    %v2369 = vpop.f32.mrb[0].mxu0
    %v2370 = vadd.f32 0.0, %v2369
    %v2371 = vpop.f32.mrb[0].mxu0
    %2372 = vmatprep.mubr.f32.mxu0 0.0
    %2373 = vmatmul.mubr.f32.gmra.mrb[0].mxu0 %v848
    %v2374 = vpop.f32.mrb[0].mxu0
    %v2375 = vadd.f32 0.0, %v2374
    %v2376 = vpop.f32.mrb[0].mxu0
    %2377 = vmatprep.mubr.f32.mxu0 0.0
    %2378 = vmatmul.mubr.f32.gmra.mrb[0].mxu0 %v851
    %v2379 = vpop.f32.mrb[0].mxu0
    %v2380 = vadd.f32 0.0, %v2379
    %v2381 = vpop.f32.mrb[0].mxu0
    %2382 = vmatprep.mubr.f32.mxu0 0.0
    %2383 = vmatmul.mubr.f32.gmra.mrb[0].mxu0 %v854
    %v2384 = vpop.f32.mrb[0].mxu0
    %v2385 = vadd.f32 0.0, %v2384
    %v2386 = vpop.f32.mrb[0].mxu0
    %2387 = vmatprep.mubr.f32.mxu0 0.0
    %2388 = vmatmul.mubr.f32.gmra.mrb[0].mxu0 %v857
    %v2389 = vpop.f32.mrb[0].mxu0
    %v2390 = vadd.f32 0.0, %v2389
    %v2391 = vpop.f32.mrb[0].mxu0
    %2392 = vmatprep.mubr.f32.mxu0 0.0
    %2393 = vmatmul.mubr.f32.gmra.mrb[0].mxu0 %v860
    %v2394 = vpop.f32.mrb[0].mxu0
    %v2395 = vadd.f32 0.0, %v2394
    %v2396 = vpop.f32.mrb[0].mxu0
    %2397 = vdwg.mxu0
    %v2398 = vadd.f32 %v2257, %v2340
    %v2399 = vadd.f32 %v2258, %v2345
    %v2400 = vadd.f32 %v2259, %v2350
    %v2401 = vadd.f32 %v2260, %v2355
    %v2402 = vadd.f32 %v2261, %v2360
    %v2403 = vadd.f32 %v2262, %v2365
    %v2404 = vadd.f32 %v2263, %v2370
    %v2405 = vadd.f32 %v2264, %v2375
    %v2406 = vadd.f32 %v2265, %v2380
    %v2407 = vadd.f32 %v2266, %v2385
    %v2408 = vadd.f32 %v2267, %v2390
    %v2409 = vadd.f32 %v2268, %v2395
    %v2410 = vxor.u32 %v2398, 2147483648
    %v2411 = vxor.u32 %v2399, 2147483648
    %v2412 = vxor.u32 %v2400, 2147483648
    %v2413 = vxor.u32 %v2401, 2147483648
    %v2414 = vxor.u32 %v2402, 2147483648
    %v2415 = vxor.u32 %v2403, 2147483648
    %v2416 = vxor.u32 %v2404, 2147483648
    %v2417 = vxor.u32 %v2405, 2147483648
    %v2418 = vxor.u32 %v2406, 2147483648
    %v2419 = vxor.u32 %v2407, 2147483648
    %v2420 = vxor.u32 %v2408, 2147483648
    %v2421 = vxor.u32 %v2409, 2147483648
    %v2422 = vmul.f32 %v2410, 1.442695
    %v2423 = vpow.pop %v2422
    %v2424 = vmul.f32 %v2411, 1.442695
    %v2425 = vpow.pop %v2424
    %v2426 = vmul.f32 %v2412, 1.442695
    %v2427 = vpow.pop %v2426
    %v2428 = vmul.f32 %v2413, 1.442695
    %v2429 = vpow.pop %v2428
    %v2430 = vmul.f32 %v2414, 1.442695
    %v2431 = vpow.pop %v2430
    %v2432 = vmul.f32 %v2415, 1.442695
    %v2433 = vpow.pop %v2432
    %v2434 = vmul.f32 %v2416, 1.442695
    %v2435 = vpow.pop %v2434
    %v2436 = vmul.f32 %v2417, 1.442695
    %v2437 = vpow.pop %v2436
    %v2438 = vmul.f32 %v2418, 1.442695
    %v2439 = vpow.pop %v2438
    %v2440 = vmul.f32 %v2419, 1.442695
    %v2441 = vpow.pop %v2440
    %v2442 = vmul.f32 %v2420, 1.442695
    %v2443 = vpow.pop %v2442
    %v2444 = vmul.f32 %v2421, 1.442695
    %v2445 = vpow.pop %v2444
    %v2446 = vadd.f32 %v2423, 1.0
    %v2447 = vadd.f32 %v2425, 1.0
    %v2448 = vadd.f32 %v2427, 1.0
    %v2449 = vadd.f32 %v2429, 1.0
    %v2450 = vadd.f32 %v2431, 1.0
    %v2451 = vadd.f32 %v2433, 1.0
    %v2452 = vadd.f32 %v2435, 1.0
    %v2453 = vadd.f32 %v2437, 1.0
    %v2454 = vadd.f32 %v2439, 1.0
    %v2455 = vadd.f32 %v2441, 1.0
    %v2456 = vadd.f32 %v2443, 1.0
    %v2457 = vadd.f32 %v2445, 1.0
    %v2458 = vrcp.pop %v2446
    %v2459 = vmul.f32 1.0, %v2458
    %v2460 = vrcp.pop %v2447
    %v2461 = vmul.f32 1.0, %v2460
    %v2462 = vrcp.pop %v2448
    %v2463 = vmul.f32 1.0, %v2462
    %v2464 = vrcp.pop %v2449
    %v2465 = vmul.f32 1.0, %v2464
    %v2466 = vrcp.pop %v2450
    %v2467 = vmul.f32 1.0, %v2466
    %v2468 = vrcp.pop %v2451
    %v2469 = vmul.f32 1.0, %v2468
    %v2470 = vrcp.pop %v2452
    %v2471 = vmul.f32 1.0, %v2470
    %v2472 = vrcp.pop %v2453
    %v2473 = vmul.f32 1.0, %v2472
    %v2474 = vrcp.pop %v2454
    %v2475 = vmul.f32 1.0, %v2474
    %v2476 = vrcp.pop %v2455
    %v2477 = vmul.f32 1.0, %v2476
    %v2478 = vrcp.pop %v2456
    %v2479 = vmul.f32 1.0, %v2478
    %v2480 = vrcp.pop %v2457
    %v2481 = vmul.f32 1.0, %v2480
    %v2482 = vmul.f32 %v2269, %v2467
    %v2483 = vmul.f32 %v2270, %v2469
    %v2484 = vmul.f32 %v2271, %v2471
    %v2485 = vmul.f32 %v2272, %v2473
    %v2486 = vmul.f32 %v2253, %v2459
    %v2487 = vmul.f32 %v2254, %v2461
    %v2488 = vmul.f32 %v2255, %v2463
    %v2489 = vmul.f32 %v2256, %v2465
    %v2490 = vadd.f32 %v2482, %v2486
    %v2491 = vadd.f32 %v2483, %v2487
    %v2492 = vadd.f32 %v2484, %v2488
    %v2493 = vadd.f32 %v2485, %v2489
    %v2494 = vtanh.pop %v2490
    %v2495 = vtanh.pop %v2491
    %v2496 = vtanh.pop %v2492
    %v2497 = vtanh.pop %v2493
    %v2498 = vmul.f32 %v2494, %v2475
    %v2499 = vmul.f32 %v2495, %v2477
    %v2500 = vmul.f32 %v2496, %v2479
    %v2501 = vmul.f32 %v2497, %v2481
    %v2502 = vld [vmem:[#allocation3] sm:$0xff]
    %v2503 = vld [vmem:[#allocation3 + $0x8] sm:$0xff]
    %v2504 = vld [vmem:[#allocation3 + $0x10] sm:$0xff]
    %v2505 = vld [vmem:[#allocation3 + $0x18] sm:$0xff]
    %v2506 = vld [vmem:[%s5] sm:$0x1]
    %v2508 = vlaneseq
    %v2509 = vshrl.u32 %v2508, 7
    %v2510 = vsub.s32 0, %v2509
    %v2511 = vrot.slane %v2506, %v2510
    %2513 = vxpose.xlu0.b32.start [1/16] %v2498, 128
    %2514 = vxpose.xlu0.b32.cont [2/16] %v2499, 128
    %2515 = vxpose.xlu0.b32.cont [3/16] %v2500, 128
    %2516 = vxpose.xlu0.b32.cont [4/16] %v2501, 128
    %2517 = vxpose.xlu0.b32.cont [5/16] 0.0, 128
    %2518 = vxpose.xlu0.b32.cont [6/16] 0.0, 128
    %2519 = vxpose.xlu0.b32.cont [7/16] 0.0, 128
    %2520 = vxpose.xlu0.b32.cont [8/16] 0.0, 128
    %2521 = vxpose.xlu0.b32.cont [9/16] 0.0, 128
    %2522 = vxpose.xlu0.b32.cont [10/16] 0.0, 128
    %2523 = vxpose.xlu0.b32.cont [11/16] 0.0, 128
    %2524 = vxpose.xlu0.b32.cont [12/16] 0.0, 128
    %2525 = vxpose.xlu0.b32.cont [13/16] 0.0, 128
    %2526 = vxpose.xlu0.b32.cont [14/16] 0.0, 128
    %2527 = vxpose.xlu0.b32.cont [15/16] 0.0, 128
    %2528 = vxpose.xlu0.b32.end [16/16] 0.0, 128
    %v2529 = vpop.trf.xlu0
    %v2530 = vpop.trf.xlu0
    %v2531 = vpop.trf.xlu0
    %v2532 = vpop.trf.xlu0
    %v2533 = vpop.trf.xlu0
    %v2534 = vpop.trf.xlu0
    %v2535 = vpop.trf.xlu0
    %v2536 = vpop.trf.xlu0
    %v2537 = vpop.trf.xlu0
    %v2538 = vpop.trf.xlu0
    %v2539 = vpop.trf.xlu0
    %v2540 = vpop.trf.xlu0
    %v2541 = vpop.trf.xlu0
    %v2542 = vpop.trf.xlu0
    %v2543 = vpop.trf.xlu0
    %v2544 = vpop.trf.xlu0
    %v2546 = vsel %vm346, %v2529, 0
    %v2549 = vsel %vm346, %v2530, 0
    %v2552 = vsel %vm346, %v2531, 0
    %v2555 = vsel %vm346, %v2532, 0
    %2557 = vmatprep.subr.mxu0 0.0
    %2558 = vmatpush1.msra.mxu0 %v2502
    %2559 = vmatprep.subr.mxu0 0.0
    %2560 = vmatpush1.msra.mxu0 %v2503
    %2561 = vmatprep.subr.mxu0 0.0
    %2562 = vmatpush1.msra.mxu0 %v2504
    %2563 = vmatprep.subr.mxu0 0.0
    %2564 = vmatpush1.msra.mxu0 %v2505
    %2565 = vmatprep.subr.mxu0 0.0
    %2566 = vmatpush1.msra.mxu0 0.0
    %2567 = vmatprep.subr.mxu0 0.0
    %2568 = vmatpush1.msra.mxu0 0.0
    %2569 = vmatprep.subr.mxu0 0.0
    %2570 = vmatpush1.msra.mxu0 0.0
    %2571 = vmatprep.subr.mxu0 0.0
    %2572 = vmatpush1.msra.mxu0 0.0
    %2573 = vmatprep.subr.mxu0 0.0
    %2574 = vmatpush1.msra.mxu0 0.0
    %2575 = vmatprep.subr.mxu0 0.0
    %2576 = vmatpush1.msra.mxu0 0.0
    %2577 = vmatprep.subr.mxu0 0.0
    %2578 = vmatpush1.msra.mxu0 0.0
    %2579 = vmatprep.subr.mxu0 0.0
    %2580 = vmatpush1.msra.mxu0 0.0
    %2581 = vmatprep.subr.mxu0 0.0
    %2582 = vmatpush1.msra.mxu0 0.0
    %2583 = vmatprep.subr.mxu0 0.0
    %2584 = vmatpush1.msra.mxu0 0.0
    %2585 = vmatprep.subr.mxu0 0.0
    %2586 = vmatpush1.msra.mxu0 0.0
    %2587 = vmatprep.subr.mxu0 0.0
    %2588 = vmatpush1.msra.mxu0 0.0
    %2589 = vmatprep.subr.mxu0 0.0
    %2590 = vmatpush1.msra.mxu0 0.0
    %2591 = vmatprep.subr.mxu0 0.0
    %2592 = vmatpush1.msra.mxu0 0.0
    %2593 = vmatprep.subr.mxu0 0.0
    %2594 = vmatpush1.msra.mxu0 0.0
    %2595 = vmatprep.subr.mxu0 0.0
    %2596 = vmatpush1.msra.mxu0 0.0
    %2597 = vmatprep.subr.mxu0 0.0
    %2598 = vmatpush1.msra.mxu0 0.0
    %2599 = vmatprep.subr.mxu0 0.0
    %2600 = vmatpush1.msra.mxu0 0.0
    %2601 = vmatprep.subr.mxu0 0.0
    %2602 = vmatpush1.msra.mxu0 0.0
    %2603 = vmatprep.subr.mxu0 0.0
    %2604 = vmatpush1.msra.mxu0 0.0
    %2605 = vmatprep.subr.mxu0 0.0
    %2606 = vmatpush1.msra.mxu0 0.0
    %2607 = vmatprep.subr.mxu0 0.0
    %2608 = vmatpush1.msra.mxu0 0.0
    %2609 = vmatprep.subr.mxu0 0.0
    %2610 = vmatpush1.msra.mxu0 0.0
    %2611 = vmatprep.subr.mxu0 0.0
    %2612 = vmatpush1.msra.mxu0 0.0
    %2613 = vmatprep.subr.mxu0 0.0
    %2614 = vmatpush1.msra.mxu0 0.0
    %2615 = vmatprep.subr.mxu0 0.0
    %2616 = vmatpush1.msra.mxu0 0.0
    %2617 = vmatprep.subr.mxu0 0.0
    %2618 = vmatpush1.msra.mxu0 0.0
    %2619 = vmatprep.subr.mxu0 0.0
    %2620 = vmatpush1.msra.mxu0 0.0
    %2621 = vmatprep.mubr.f32.mxu0 0.0
    %2622 = vmatmul.mubr.f32.gmra.mrb[0].mxu0 %v2546
    %v2623 = vpop.f32.mrb[0].mxu0
    %v2624 = vadd.f32 %v2511, %v2623
    %v2625 = vpop.f32.mrb[0].mxu0
    %2626 = vmatprep.mubr.f32.mxu0 0.0
    %2627 = vmatmul.mubr.f32.gmra.mrb[0].mxu0 %v2549
    %v2628 = vpop.f32.mrb[0].mxu0
    %v2629 = vadd.f32 %v2511, %v2628
    %v2630 = vpop.f32.mrb[0].mxu0
    %2631 = vmatprep.mubr.f32.mxu0 0.0
    %2632 = vmatmul.mubr.f32.gmra.mrb[0].mxu0 %v2552
    %v2633 = vpop.f32.mrb[0].mxu0
    %v2634 = vadd.f32 %v2511, %v2633
    %v2635 = vpop.f32.mrb[0].mxu0
    %2636 = vmatprep.mubr.f32.mxu0 0.0
    %2637 = vmatmul.mubr.f32.gmra.mrb[0].mxu0 %v2555
    %v2638 = vpop.f32.mrb[0].mxu0
    %v2639 = vadd.f32 %v2511, %v2638
    %v2640 = vpop.f32.mrb[0].mxu0
    %2641 = vdwg.mxu0
    %2642 = vst [vmem:[#allocation6] sm:$0xff] %v2624
    %2643 = vst [vmem:[#allocation6 + $0x8] sm:$0xff] %v2629
    %2644 = vst [vmem:[#allocation6 + $0x10] sm:$0xff] %v2634
    %2645 = vst [vmem:[#allocation6 + $0x18] sm:$0xff] %v2639
    // Predicated region
    $region30: #{tpu_custom_call.1} parent=1 // pred_check
      _
    $region31: #{tpu_custom_call.1} parent=1 // pred_check_branch
      %2647 = sbr.rel (0) target = $region33
    $region32: #{tpu_custom_call.1} parent=1 // pred_region
      %s2649 = ssub.s32 512, 512
      %2650 = vsyncadd [#allocation5], %s2649
      %s2651 = sshll.u32 [#allocation6], 4
      %s2652 = int_to_ptr.vmem [resolvable:$true] %s2651
      %2657 = dma.vmem_to_hbm [thread:$0]  %s2652, 512, %s6, [#allocation5], 128, 128, 8
    $region33: #{tpu_custom_call.1} parent=1 // pred_fallthru
      _
    // Predicated region
    $region34: #{tpu_custom_call.1} parent=1 // pred_check
      _
    $region35: #{tpu_custom_call.1} parent=1 // pred_check_branch
      %2659 = sbr.rel (0) target = $region37
    $region36: #{tpu_custom_call.1} parent=1 // pred_region
      %2660 = dma.done [#allocation5], 512
    $region37: #{tpu_custom_call.1} parent=1 // pred_fallthru
      _
    %2661 = vsyncpa [#allocation4], 1
    %2662 = vsyncpa [#allocation5], 1

</llo_original>
